<compile_context>
chip_gen: v5e
topology: v5e:2x2
jax: 0.10.0
libtpu: 0.0.40
codegen_flags: <defaults>
</compile_context>

<pallas_src>
import jax
import jax.numpy as jnp
from jax import lax
from jax.experimental import pallas as pl
from jax.experimental.pallas import tpu as pltpu


# parity -> ((kernel_row, tap_offset), ...): which conv-equivalent kernel rows feed each
# output parity of the stride-2 transposed conv (sub-pixel decomposition).
_DECONV_TAPS = {0: ((1, 1),), 1: ((0, 1), (2, 2))}

_VMEM_LIMIT = None


def _vmem_limit_bytes():
    global _VMEM_LIMIT
    if _VMEM_LIMIT is None:
        try:
            cap = int(pltpu.get_tpu_info().vmem_capacity_bytes)
        except Exception:            # unknown chip / interpret mode
            cap = 128 * 1024 * 1024
        _VMEM_LIMIT = min((cap * 3) // 4, 96 * 1024 * 1024)
    return _VMEM_LIMIT


def _pick_dblk(d, hout, wout, cin, cout_total, budget=4 * 1024 * 1024):
    """Largest divisor of d whose per-step working set stays within `budget` bytes."""
    for dblk in sorted((x for x in range(1, d + 1) if d % x == 0), reverse=True):
        m = dblk * hout * wout
        est = ((dblk + 2) * (hout + 2) * (wout + 2) * cin * 2   # halo tile (bf16)
               + 2 * m * 27 * cin * 2                            # col matrix + concat temp
               + m * cout_total * 4) * 2                         # f32 result, dbl buffer
        if est <= budget:
            return dblk
    return 1


# -----------------------------------------------------------------------------
# Pallas kernel: fused (D-blocked) conv tile; one K-concat MXU dot per group.
# -----------------------------------------------------------------------------
def _make_fused_kernel(n_inputs, groups, dblk, hout, wout, cin, cout,
                       relu, has_res, post_add):
    """groups: tuple of tap-tuples; tap = (input_idx, dd, dh, dw).  The weight ref holds
    the per-group column blocks stacked along rows in the same order."""
    assert not post_add or has_res
    m = dblk * hout * wout

    def kernel(*refs):
        w_ref = refs[n_inputs]
        b_ref = refs[n_inputs + 1]
        res_ref = refs[n_inputs + 2] if has_res else None
        o_ref = refs[-1]

        # Load each halo'd tile once; every tap is an in-VMEM static slice of it.
        tiles = [refs[t][0] for t in range(n_inputs)]     # [Dblk+2, Hs, Ws, Cin] bf16

        outs = []
        k_off = 0
        for taps in groups:
            views = [tiles[inp][dd:dd + dblk, dh:dh + hout, dw:dw + wout, :]
                     for (inp, dd, dh, dw) in taps]
            col4 = views[0] if len(views) == 1 else jnp.concatenate(views, axis=-1)
            kg = len(taps) * cin
            col = col4.reshape(m, kg)                     # [M, K_g] bf16
            outs.append(jnp.dot(col, w_ref[k_off:k_off + kg, :],
                                preferred_element_type=jnp.float32))
            k_off += kg
        y = outs[0] if len(outs) == 1 else jnp.concatenate(outs, axis=-1)

        y = y + b_ref[...]                                # [1, G*Cout] f32 broadcast
        if has_res:
            r = res_ref[0, 0].astype(jnp.float32)
            y = y + r
        if relu:
            y = jnp.maximum(y, 0.0)
        if post_add:
            y = y + r
        o_ref[0, 0] = y.astype(o_ref.dtype)               # single store per step

    return kernel


def _fused_conv_call(inputs, groups, w_all, bias, *, dblk, hout, wout, relu,
                     residual=None, post_add=False, out_dtype=jnp.bfloat16):
    """inputs: list of [B, n_db*(Dblk+2), Hs, Ws, Cin] bf16 halo'd tiles.
    groups: tuple of tap tuples (see _make_fused_kernel).
    w_all: [sum_g K_g, Cout] bf16 (BN folded).  bias: [1, len(groups)*Cout] f32.
    residual (optional): [B, n_db, M, len(groups)*Cout] bf16."""
    b = inputs[0].shape[0]
    n_db = inputs[0].shape[1] // (dblk + 2)
    cin = inputs[0].shape[-1]
    ktot, cout = w_all.shape
    gcout = bias.shape[1]
    m = dblk * hout * wout
    assert ktot == sum(len(t) for t in groups) * cin
    assert gcout == len(groups) * cout
    has_res = residual is not None

    in_specs, args = [], []
    for x in inputs:
        hs, ws = x.shape[2], x.shape[3]
        in_specs.append(pl.BlockSpec((1, dblk + 2, hs, ws, cin),
                                     lambda i, j: (i, j, 0, 0, 0)))
        args.append(x)
    # Constant index maps -> weight / bias fetched once, VMEM-resident over the grid.
    in_specs.append(pl.BlockSpec((ktot, cout), lambda i, j: (0, 0)))
    args.append(w_all)
    in_specs.append(pl.BlockSpec((1, gcout), lambda i, j: (0, 0)))
    args.append(bias)
    if has_res:
        in_specs.append(pl.BlockSpec((1, 1, m, gcout), lambda i, j: (i, j, 0, 0)))
        args.append(residual)

    kernel = _make_fused_kernel(len(inputs), tuple(groups), dblk, hout, wout,
                                cin, cout, relu, has_res, post_add)
    return pl.pallas_call(
        kernel,
        out_shape=jax.ShapeDtypeStruct((b, n_db, m, gcout), out_dtype),
        grid_spec=pltpu.PrefetchScalarGridSpec(
            num_scalar_prefetch=0,
            grid=(b, n_db),
            in_specs=in_specs,
            out_specs=pl.BlockSpec((1, 1, m, gcout), lambda i, j: (i, j, 0, 0)),
        ),
        compiler_params=pltpu.CompilerParams(
            dimension_semantics=("parallel", "parallel"),
            vmem_limit_bytes=_vmem_limit_bytes()),
    )(*args)


# -----------------------------------------------------------------------------
# Layer wrappers (XLA glue: halo pad, depth windows, parity splits, interleave).
# -----------------------------------------------------------------------------
def _depth_windows(xpad, dblk):
    """[B, D+2, Hs, Ws, C] -> [B, n_db*(Dblk+2), Hs, Ws, C] overlapping depth windows
    (identity when Dblk == D)."""
    d = xpad.shape[1] - 2
    n_db = d // dblk
    if n_db == 1:
        return xpad
    return jnp.concatenate(
        [xpad[:, j * dblk:j * dblk + dblk + 2] for j in range(n_db)], axis=1)


def conv3d_block(x, p, *, stride_hw=1, relu=True, residual=None, post_add=False,
                 out_dtype=jnp.bfloat16):
    """Conv3d(k=3, stride=(1,s,s), pad=1, bias=False) [+BN] [+res] [+ReLU] [+post res]."""
    b, d, h, w, cin = x.shape
    cout = p['w'].shape[1]
    assert p['w'].shape[0] == 27 * cin
    xpad = jnp.pad(x, ((0, 0), (1, 1), (1, 1), (1, 1), (0, 0)))

    if stride_hw == 1:
        hout, wout = h, w
        dblk = _pick_dblk(d, hout, wout, cin, cout)
        inputs = [_depth_windows(xpad, dblk)]
        taps = tuple((0, kd, kh, kw)
                     for kd in range(3) for kh in range(3) for kw in range(3))
    else:
        hout, wout = h // 2, w // 2
        dblk = _pick_dblk(d, hout, wout, cin, cout)
        xw = _depth_windows(xpad, dblk)
        # TODO(synk): these parity slabs are materialized by XLA (one extra HBM round
        # trip); an in-kernel strided (pl.ds stride=2) load would remove it.
        inputs = [xw[:, :, hp::2, wp::2, :] for hp in (0, 1) for wp in (0, 1)]
        taps = tuple((2 * (kh & 1) + (kw & 1), kd, kh >> 1, kw >> 1)
                     for kd in range(3) for kh in range(3) for kw in range(3))

    n_db = d // dblk
    res = None
    if residual is not None:
        res = residual.reshape(b, n_db, dblk * hout * wout, cout)
    out = _fused_conv_call(inputs, (taps,), p['w'], p['b'], dblk=dblk, hout=hout,
                           wout=wout, relu=relu, residual=res, post_add=post_add,
                           out_dtype=out_dtype)
    return out.reshape(b, d, hout, wout, cout)


def deconv3d_block(x, p, *, residual=None, relu=False, post_add=False,
                   out_dtype=jnp.bfloat16):
    """ConvTranspose3d(k=3, stride=(1,2,2), pad=1, out_pad=(0,1,1), bias=False) [+BN]
    [+res] [+ReLU] [+post-ReLU res]: one fused kernel over all 4 sub-pixel phases."""
    b, d, h, w, cin = x.shape
    cout = p['w'].shape[1]
    assert p['w'].shape[0] == 27 * cin
    xpad = jnp.pad(x, ((0, 0), (1, 1), (1, 1), (1, 1), (0, 0)))
    dblk = _pick_dblk(d, h, w, cin, 4 * cout)
    n_db = d // dblk
    xw = _depth_windows(xpad, dblk)

    groups = tuple(
        tuple((0, kd, dh, dw)
              for kd in range(3)
              for _, dh in _DECONV_TAPS[ph]
              for _, dw in _DECONV_TAPS[pw])
        for ph in (0, 1) for pw in (0, 1))

    res = None
    if residual is not None:
        r = residual.reshape(b, d, h, 2, w, 2, cout)
        r = jnp.transpose(r, (0, 1, 2, 4, 3, 5, 6))       # [B, D, h, w, ph, pw, C]
        res = r.reshape(b, n_db, dblk * h * w, 4 * cout)

    out = _fused_conv_call([xw], groups, p['w'], p['b'], dblk=dblk, hout=h, wout=w,
                           relu=relu, residual=res, post_add=post_add,
                           out_dtype=out_dtype)
    # Interleave phases: out[..., 2y+ph, 2x+pw, :] = phase(ph,pw)[..., y, x, :]
    y = out.reshape(b, d, h, w, 2, 2, cout)
    y = jnp.transpose(y, (0, 1, 2, 4, 3, 5, 6))           # [B, D, h, ph, w, pw, C]
    return y.reshape(b, d, 2 * h, 2 * w, cout)


# -----------------------------------------------------------------------------
# DeepPrunerAggregator forward.
# -----------------------------------------------------------------------------
def deep_pruner_aggregator_forward(raw_cost, prepared):
    """raw_cost: [B, in_planes, D, H, W] f32 -> [cost], cost: [B, D, H, W] f32."""
    x = jnp.transpose(raw_cost, (0, 2, 3, 4, 1)).astype(jnp.bfloat16)

    # dres0 / dres1
    x = conv3d_block(x, prepared['dres0_0'])
    x = conv3d_block(x, prepared['dres0_1'])
    x = conv3d_block(x, prepared['dres1_0'])
    cost = conv3d_block(x, prepared['dres1_1'])

    # dres2: HWHourglass + outer residual; residual adds / ReLUs fused in epilogues.
    out1 = conv3d_block(cost, prepared['hg_conv1'], stride_hw=2)
    out2 = conv3d_block(out1, prepared['hg_conv2'], relu=False, residual=out1)
    out3 = conv3d_block(out2, prepared['hg_conv3'], stride_hw=2)
    out4 = conv3d_block(out3, prepared['hg_conv4'], relu=False, residual=out3)
    out5 = deconv3d_block(out4, prepared['hg_deconv5'], residual=out2, relu=True)
    # out6 = relu(deconv6(out5) + cost); aggregator then adds `+ cost` again: both are
    # fused here (post_add reuses the same residual tile).
    cost = deconv3d_block(out5, prepared['hg_deconv6'], residual=cost, relu=True,
                          post_add=True)

    # classify
    x = conv3d_block(cost, prepared['cls_0'])
    # TODO(synk): the Cout=1 classifier still writes a lane-sparse [M, 1] tile; a
    # transposed weight-stationary variant (store [1, M], M on lanes) is the next lever.
    x = conv3d_block(x, prepared['cls_1'], relu=False, out_dtype=jnp.float32)
    return [x[..., 0]]                                    # [B, D, H, W]


# -----------------------------------------------------------------------------
# One-time parameter preparation (BN fold, tap-order reshape, dtype casts).
# -----------------------------------------------------------------------------
def prepare_params(params):
    prepared = {}
    for name, p in params.items():
        w = p['w'] * p['scale'][None, None, None, None, :]    # [3,3,3,Cin,Cout] f32
        cin, cout = w.shape[3], w.shape[4]
        if name.startswith('hg_deconv'):
            slabs = []
            for ph in (0, 1):
                for pw in (0, 1):
                    for kd in range(3):
                        for kh, _ in _DECONV_TAPS[ph]:
                            for kw, _ in _DECONV_TAPS[pw]:
                                slabs.append(w[kd, kh, kw])    # [Cin, Cout]
            prepared[name] = {
                'w': jnp.concatenate(slabs, axis=0).astype(jnp.bfloat16),
                'b': jnp.tile(p['bias'].reshape(1, cout).astype(jnp.float32), (1, 4)),
            }
        else:
            prepared[name] = {
                'w': w.reshape(27 * cin, cout).astype(jnp.bfloat16),
                'b': p['bias'].reshape(1, cout).astype(jnp.float32),
            }
    return prepared


# -----------------------------------------------------------------------------
# Deterministic synthetic parameters (PyTorch-equivalent raw layout).
# -----------------------------------------------------------------------------
def _bn_fold(key, c):
    k1, k2, k3, k4 = jax.random.split(key, 4)
    gamma = 1.0 + 0.1 * jax.random.normal(k1, (c,), jnp.float32)
    beta = 0.05 * jax.random.normal(k2, (c,), jnp.float32)
    mean = 0.05 * jax.random.normal(k3, (c,), jnp.float32)
    var = 0.5 + jax.random.uniform(k4, (c,), jnp.float32)
    scale = gamma / jnp.sqrt(var + 1e-5)
    bias = beta - mean * scale
    return scale, bias


def _conv_params(key, cin, cout, bn=True):
    kw, kb = jax.random.split(key)
    std = (2.0 / (27 * cin)) ** 0.5
    w = std * jax.random.normal(kw, (3, 3, 3, cin, cout), jnp.float32)
    if bn:
        scale, bias = _bn_fold(kb, cout)
    else:
        scale, bias = jnp.ones((cout,), jnp.float32), jnp.zeros((cout,), jnp.float32)
    return {'w': w, 'scale': scale, 'bias': bias}


def _deconv_params(key, cin, cout):
    kw, kb = jax.random.split(key)
    std = (2.0 / (27 * cin)) ** 0.5
    # PyTorch ConvTranspose3d weight layout [Cin, Cout, kD, kH, kW]
    w_t = std * jax.random.normal(kw, (cin, cout, 3, 3, 3), jnp.float32)
    # conv-equivalent weight: flip spatially, swap channel axes -> [3,3,3,Cin,Cout]
    w = jnp.transpose(jnp.flip(w_t, axis=(2, 3, 4)), (2, 3, 4, 0, 1))
    scale, bias = _bn_fold(kb, cout)
    return {'w': w, 'scale': scale, 'bias': bias}


def init_params(key, in_planes, hg):
    keys = jax.random.split(key, 12)
    return {
        'dres0_0': _conv_params(keys[0], in_planes, 64),
        'dres0_1': _conv_params(keys[1], 64, 32),
        'dres1_0': _conv_params(keys[2], 32, 32),
        'dres1_1': _conv_params(keys[3], 32, hg),
        'hg_conv1': _conv_params(keys[4], hg, hg * 2),
        'hg_conv2': _conv_params(keys[5], hg * 2, hg * 2),
        'hg_conv3': _conv_params(keys[6], hg * 2, hg * 4),
        'hg_conv4': _conv_params(keys[7], hg * 4, hg * 4),
        'hg_deconv5': _deconv_params(keys[8], hg * 4, hg * 2),
        'hg_deconv6': _deconv_params(keys[9], hg * 2, hg),
        'cls_0': _conv_params(keys[10], hg, hg * 2),
        'cls_1': _conv_params(keys[11], hg * 2, 1, bn=False),
    }


# -----------------------------------------------------------------------------
# Precision-matched pure-JAX reference (lax convs, bf16 weights/activations,
# f32 accumulation + epilogue, single bf16 round per fused block).
# -----------------------------------------------------------------------------
def reference_forward(raw_cost, params):
    f32 = jnp.float32

    def conv(x_bf16, p, stride=(1, 1, 1)):
        wq = (p['w'] * p['scale'][None, None, None, None, :]).astype(jnp.bfloat16)
        y = lax.conv_general_dilated(
            x_bf16, wq, window_strides=stride, padding=((1, 1), (1, 1), (1, 1)),
            dimension_numbers=('NDHWC', 'DHWIO', 'NDHWC'),
            preferred_element_type=f32)
        return y + p['bias'].astype(f32)[None, None, None, None, :]

    def deconv(x_bf16, p):
        wq = (p['w'] * p['scale'][None, None, None, None, :]).astype(jnp.bfloat16)
        y = lax.conv_general_dilated(
            x_bf16, wq, window_strides=(1, 1, 1),
            padding=((1, 1), (1, 2), (1, 2)), lhs_dilation=(1, 2, 2),
            dimension_numbers=('NDHWC', 'DHWIO', 'NDHWC'),
            preferred_element_type=f32)
        return y + p['bias'].astype(f32)[None, None, None, None, :]

    store = lambda v: v.astype(jnp.bfloat16)
    relu = lambda v: jnp.maximum(v, 0.0)

    x = jnp.transpose(raw_cost, (0, 2, 3, 4, 1)).astype(jnp.bfloat16)
    x = store(relu(conv(x, params['dres0_0'])))
    x = store(relu(conv(x, params['dres0_1'])))
    x = store(relu(conv(x, params['dres1_0'])))
    cost = store(relu(conv(x, params['dres1_1'])))
    out1 = store(relu(conv(cost, params['hg_conv1'], stride=(1, 2, 2))))
    out2 = store(conv(out1, params['hg_conv2']) + out1.astype(f32))
    out3 = store(relu(conv(out2, params['hg_conv3'], stride=(1, 2, 2))))
    out4 = store(conv(out3, params['hg_conv4']) + out3.astype(f32))
    out5 = store(relu(deconv(out4, params['hg_deconv5']) + out2.astype(f32)))
    cost2 = store(relu(deconv(out5, params['hg_deconv6']) + cost.astype(f32))
                  + cost.astype(f32))
    x = store(relu(conv(cost2, params['cls_0'])))
    y = conv(x, params['cls_1'])                           # f32 output, no ReLU
    return y[..., 0]


if __name__ == "__main__":
    key = jax.random.PRNGKey(0)
    kx, kp, k1, k2 = jax.random.split(key, 4)

    B, C_IN, D, H, W = 2, 16, 4, 8, 8        # in_planes=16, MaxDisparity=4
    HG = 8                                   # hourglass_in_planes
    raw_cost = jax.random.normal(kx, (B, C_IN, D, H, W), jnp.float32)
    params = init_params(kp, C_IN, HG)
    prepared = prepare_params(params)        # one-time BN fold / reshape / casts

    # unit check: stride-(1,2,2) conv (parity-slab path) vs lax.conv
    p1 = params['hg_conv1']
    a = jax.random.normal(k1, (B, D, H, W, HG), jnp.float32)
    wq = (p1['w'] * p1['scale'][None, None, None, None, :]).astype(jnp.bfloat16)
    ref = lax.conv_general_dilated(
        a.astype(jnp.bfloat16), wq, window_strides=(1, 2, 2),
        padding=((1, 1), (1, 1), (1, 1)),
        dimension_numbers=('NDHWC', 'DHWIO', 'NDHWC'),
        preferred_element_type=jnp.float32)
    ref = jnp.maximum(ref + p1['bias'][None, None, None, None, :], 0.0)
    got = conv3d_block(a.astype(jnp.bfloat16), prepared['hg_conv1'],
                       stride_hw=2).astype(jnp.float32)
    assert jnp.allclose(ref, got, rtol=2e-2, atol=2e-2), "strided conv mismatch"

    # unit check: fused 4-phase ConvTranspose3d vs lax.conv with lhs_dilation
    p2 = params['hg_deconv6']
    bdec = jax.random.normal(k2, (B, D, H // 2, W // 2, HG * 2), jnp.float32)
    wq = (p2['w'] * p2['scale'][None, None, None, None, :]).astype(jnp.bfloat16)
    ref = lax.conv_general_dilated(
        bdec.astype(jnp.bfloat16), wq, window_strides=(1, 1, 1),
        padding=((1, 1), (1, 2), (1, 2)), lhs_dilation=(1, 2, 2),
        dimension_numbers=('NDHWC', 'DHWIO', 'NDHWC'),
        preferred_element_type=jnp.float32)
    ref = ref + p2['bias'][None, None, None, None, :]
    got = deconv3d_block(bdec.astype(jnp.bfloat16), prepared['hg_deconv6'],
                         relu=False).astype(jnp.float32)
    assert jnp.allclose(ref, got, rtol=2e-2, atol=2e-2), "deconv mismatch"

    # full forward + end-to-end check against a precision-matched lax reference
    fwd = jax.jit(deep_pruner_aggregator_forward)
    (cost,) = fwd(raw_cost, prepared)
    cost = jax.block_until_ready(cost)
    assert cost.shape == (B, D, H, W), cost.shape
    assert bool(jnp.all(jnp.isfinite(cost)))

    ref_cost = jax.jit(reference_forward)(raw_cost, params)
    err = float(jnp.max(jnp.abs(cost - ref_cost)))
    scale = float(jnp.max(jnp.abs(ref_cost)))
    assert err <= 2e-2 + 2e-2 * scale, ("end-to-end mismatch", err, scale)

    print("KERNEL_OK")
</pallas_src>

<mosaic_0001>
module attributes {stable_mosaic.version = 11 : i64} {
  func.func @kernel(%arg0: i32, %arg1: i32, %arg2: memref<1x6x5x5x8xbf16, #tpu.memory_space<vmem>>, %arg3: memref<1x6x5x5x8xbf16, #tpu.memory_space<vmem>>, %arg4: memref<1x6x5x5x8xbf16, #tpu.memory_space<vmem>>, %arg5: memref<1x6x5x5x8xbf16, #tpu.memory_space<vmem>>, %arg6: memref<216x16xbf16, #tpu.memory_space<vmem>>, %arg7: memref<1x16xf32, #tpu.memory_space<vmem>>, %arg8: memref<1x1x64x16xbf16, #tpu.memory_space<vmem>>) attributes {dimension_semantics = [#tpu.dimension_semantics<parallel>, #tpu.dimension_semantics<parallel>], iteration_bounds = array<i64: 2, 1>, scalar_prefetch = 0 : i64, scratch_operands = 0 : i64, tpu.core_type = #tpu.core_type<tc>, window_params = [{transform_indices = @transform_0, window_bounds = array<i64: 1, 6, 5, 5, 8>}, {transform_indices = @transform_1, window_bounds = array<i64: 1, 6, 5, 5, 8>}, {transform_indices = @transform_2, window_bounds = array<i64: 1, 6, 5, 5, 8>}, {transform_indices = @transform_3, window_bounds = array<i64: 1, 6, 5, 5, 8>}, {pipeline_mode = #tpu.pipeline_mode<synchronous>, transform_indices = @transform_4, window_bounds = array<i64: 216, 16>}, {pipeline_mode = #tpu.pipeline_mode<synchronous>, transform_indices = @transform_5, window_bounds = array<i64: 1, 16>}, {transform_indices = @transform_6, window_bounds = array<i64: 1, 1, 64, 16>}]} {
    %c0 = arith.constant 0 : index
    %c0_0 = arith.constant 0 : index
    %c0_1 = arith.constant 0 : index
    %c0_2 = arith.constant 0 : index
    %c0_3 = arith.constant 0 : index
    %0 = vector.load %arg2[%c0, %c0_0, %c0_1, %c0_2, %c0_3] : memref<1x6x5x5x8xbf16, #tpu.memory_space<vmem>>, vector<1x6x5x5x8xbf16>
    %1 = vector.shape_cast %0 : vector<1x6x5x5x8xbf16> to vector<6x5x5x8xbf16>
    %c0_4 = arith.constant 0 : index
    %c0_5 = arith.constant 0 : index
    %c0_6 = arith.constant 0 : index
    %c0_7 = arith.constant 0 : index
    %c0_8 = arith.constant 0 : index
    %2 = vector.load %arg3[%c0_4, %c0_5, %c0_6, %c0_7, %c0_8] : memref<1x6x5x5x8xbf16, #tpu.memory_space<vmem>>, vector<1x6x5x5x8xbf16>
    %3 = vector.shape_cast %2 : vector<1x6x5x5x8xbf16> to vector<6x5x5x8xbf16>
    %c0_9 = arith.constant 0 : index
    %c0_10 = arith.constant 0 : index
    %c0_11 = arith.constant 0 : index
    %c0_12 = arith.constant 0 : index
    %c0_13 = arith.constant 0 : index
    %4 = vector.load %arg4[%c0_9, %c0_10, %c0_11, %c0_12, %c0_13] : memref<1x6x5x5x8xbf16, #tpu.memory_space<vmem>>, vector<1x6x5x5x8xbf16>
    %5 = vector.shape_cast %4 : vector<1x6x5x5x8xbf16> to vector<6x5x5x8xbf16>
    %c0_14 = arith.constant 0 : index
    %c0_15 = arith.constant 0 : index
    %c0_16 = arith.constant 0 : index
    %c0_17 = arith.constant 0 : index
    %c0_18 = arith.constant 0 : index
    %6 = vector.load %arg5[%c0_14, %c0_15, %c0_16, %c0_17, %c0_18] : memref<1x6x5x5x8xbf16, #tpu.memory_space<vmem>>, vector<1x6x5x5x8xbf16>
    %7 = vector.shape_cast %6 : vector<1x6x5x5x8xbf16> to vector<6x5x5x8xbf16>
    %8 = vector.extract_strided_slice %1 {offsets = [0, 0, 0, 0], sizes = [4, 4, 4, 8], strides = [1, 1, 1, 1]} : vector<6x5x5x8xbf16> to vector<4x4x4x8xbf16>
    %9 = vector.extract_strided_slice %3 {offsets = [0, 0, 0, 0], sizes = [4, 4, 4, 8], strides = [1, 1, 1, 1]} : vector<6x5x5x8xbf16> to vector<4x4x4x8xbf16>
    %10 = vector.extract_strided_slice %1 {offsets = [0, 0, 1, 0], sizes = [4, 4, 4, 8], strides = [1, 1, 1, 1]} : vector<6x5x5x8xbf16> to vector<4x4x4x8xbf16>
    %11 = vector.extract_strided_slice %5 {offsets = [0, 0, 0, 0], sizes = [4, 4, 4, 8], strides = [1, 1, 1, 1]} : vector<6x5x5x8xbf16> to vector<4x4x4x8xbf16>
    %12 = vector.extract_strided_slice %7 {offsets = [0, 0, 0, 0], sizes = [4, 4, 4, 8], strides = [1, 1, 1, 1]} : vector<6x5x5x8xbf16> to vector<4x4x4x8xbf16>
    %13 = vector.extract_strided_slice %5 {offsets = [0, 0, 1, 0], sizes = [4, 4, 4, 8], strides = [1, 1, 1, 1]} : vector<6x5x5x8xbf16> to vector<4x4x4x8xbf16>
    %14 = vector.extract_strided_slice %1 {offsets = [0, 1, 0, 0], sizes = [4, 4, 4, 8], strides = [1, 1, 1, 1]} : vector<6x5x5x8xbf16> to vector<4x4x4x8xbf16>
    %15 = vector.extract_strided_slice %3 {offsets = [0, 1, 0, 0], sizes = [4, 4, 4, 8], strides = [1, 1, 1, 1]} : vector<6x5x5x8xbf16> to vector<4x4x4x8xbf16>
    %16 = vector.extract_strided_slice %1 {offsets = [0, 1, 1, 0], sizes = [4, 4, 4, 8], strides = [1, 1, 1, 1]} : vector<6x5x5x8xbf16> to vector<4x4x4x8xbf16>
    %17 = vector.extract_strided_slice %1 {offsets = [1, 0, 0, 0], sizes = [4, 4, 4, 8], strides = [1, 1, 1, 1]} : vector<6x5x5x8xbf16> to vector<4x4x4x8xbf16>
    %18 = vector.extract_strided_slice %3 {offsets = [1, 0, 0, 0], sizes = [4, 4, 4, 8], strides = [1, 1, 1, 1]} : vector<6x5x5x8xbf16> to vector<4x4x4x8xbf16>
    %19 = vector.extract_strided_slice %1 {offsets = [1, 0, 1, 0], sizes = [4, 4, 4, 8], strides = [1, 1, 1, 1]} : vector<6x5x5x8xbf16> to vector<4x4x4x8xbf16>
    %20 = vector.extract_strided_slice %5 {offsets = [1, 0, 0, 0], sizes = [4, 4, 4, 8], strides = [1, 1, 1, 1]} : vector<6x5x5x8xbf16> to vector<4x4x4x8xbf16>
    %21 = vector.extract_strided_slice %7 {offsets = [1, 0, 0, 0], sizes = [4, 4, 4, 8], strides = [1, 1, 1, 1]} : vector<6x5x5x8xbf16> to vector<4x4x4x8xbf16>
    %22 = vector.extract_strided_slice %5 {offsets = [1, 0, 1, 0], sizes = [4, 4, 4, 8], strides = [1, 1, 1, 1]} : vector<6x5x5x8xbf16> to vector<4x4x4x8xbf16>
    %23 = vector.extract_strided_slice %1 {offsets = [1, 1, 0, 0], sizes = [4, 4, 4, 8], strides = [1, 1, 1, 1]} : vector<6x5x5x8xbf16> to vector<4x4x4x8xbf16>
    %24 = vector.extract_strided_slice %3 {offsets = [1, 1, 0, 0], sizes = [4, 4, 4, 8], strides = [1, 1, 1, 1]} : vector<6x5x5x8xbf16> to vector<4x4x4x8xbf16>
    %25 = vector.extract_strided_slice %1 {offsets = [1, 1, 1, 0], sizes = [4, 4, 4, 8], strides = [1, 1, 1, 1]} : vector<6x5x5x8xbf16> to vector<4x4x4x8xbf16>
    %26 = vector.extract_strided_slice %1 {offsets = [2, 0, 0, 0], sizes = [4, 4, 4, 8], strides = [1, 1, 1, 1]} : vector<6x5x5x8xbf16> to vector<4x4x4x8xbf16>
    %27 = vector.extract_strided_slice %3 {offsets = [2, 0, 0, 0], sizes = [4, 4, 4, 8], strides = [1, 1, 1, 1]} : vector<6x5x5x8xbf16> to vector<4x4x4x8xbf16>
    %28 = vector.extract_strided_slice %1 {offsets = [2, 0, 1, 0], sizes = [4, 4, 4, 8], strides = [1, 1, 1, 1]} : vector<6x5x5x8xbf16> to vector<4x4x4x8xbf16>
    %29 = vector.extract_strided_slice %5 {offsets = [2, 0, 0, 0], sizes = [4, 4, 4, 8], strides = [1, 1, 1, 1]} : vector<6x5x5x8xbf16> to vector<4x4x4x8xbf16>
    %30 = vector.extract_strided_slice %7 {offsets = [2, 0, 0, 0], sizes = [4, 4, 4, 8], strides = [1, 1, 1, 1]} : vector<6x5x5x8xbf16> to vector<4x4x4x8xbf16>
    %31 = vector.extract_strided_slice %5 {offsets = [2, 0, 1, 0], sizes = [4, 4, 4, 8], strides = [1, 1, 1, 1]} : vector<6x5x5x8xbf16> to vector<4x4x4x8xbf16>
    %32 = vector.extract_strided_slice %1 {offsets = [2, 1, 0, 0], sizes = [4, 4, 4, 8], strides = [1, 1, 1, 1]} : vector<6x5x5x8xbf16> to vector<4x4x4x8xbf16>
    %33 = vector.extract_strided_slice %3 {offsets = [2, 1, 0, 0], sizes = [4, 4, 4, 8], strides = [1, 1, 1, 1]} : vector<6x5x5x8xbf16> to vector<4x4x4x8xbf16>
    %34 = vector.extract_strided_slice %1 {offsets = [2, 1, 1, 0], sizes = [4, 4, 4, 8], strides = [1, 1, 1, 1]} : vector<6x5x5x8xbf16> to vector<4x4x4x8xbf16>
    %35 = tpu.concatenate %8, %9, %10, %11, %12, %13, %14, %15, %16, %17, %18, %19, %20, %21, %22, %23 in 3 : vector<4x4x4x8xbf16>, vector<4x4x4x8xbf16>, vector<4x4x4x8xbf16>, vector<4x4x4x8xbf16>, vector<4x4x4x8xbf16>, vector<4x4x4x8xbf16>, vector<4x4x4x8xbf16>, vector<4x4x4x8xbf16>, vector<4x4x4x8xbf16>, vector<4x4x4x8xbf16>, vector<4x4x4x8xbf16>, vector<4x4x4x8xbf16>, vector<4x4x4x8xbf16>, vector<4x4x4x8xbf16>, vector<4x4x4x8xbf16>, vector<4x4x4x8xbf16> -> vector<4x4x4x128xbf16>
    %36 = tpu.concatenate %24, %25, %26, %27, %28, %29, %30, %31, %32, %33, %34 in 3 : vector<4x4x4x8xbf16>, vector<4x4x4x8xbf16>, vector<4x4x4x8xbf16>, vector<4x4x4x8xbf16>, vector<4x4x4x8xbf16>, vector<4x4x4x8xbf16>, vector<4x4x4x8xbf16>, vector<4x4x4x8xbf16>, vector<4x4x4x8xbf16>, vector<4x4x4x8xbf16>, vector<4x4x4x8xbf16> -> vector<4x4x4x88xbf16>
    %37 = tpu.concatenate %35, %36 in 3 : vector<4x4x4x128xbf16>, vector<4x4x4x88xbf16> -> vector<4x4x4x216xbf16>
    %38 = vector.shape_cast %37 : vector<4x4x4x216xbf16> to vector<64x216xbf16>
    %c0_19 = arith.constant 0 : index
    %c0_20 = arith.constant 0 : index
    %39 = vector.load %arg6[%c0_19, %c0_20] : memref<216x16xbf16, #tpu.memory_space<vmem>>, vector<216x16xbf16>
    %cst = arith.constant dense<0.000000e+00> : vector<64x16xf32>
    %40 = tpu.matmul %38, %39, %cst {dimension_numbers = #tpu.dot_dimension_numbers<[1], [0], [0], [1], [0, 0, 1, 1], [], []>} : vector<64x216xbf16>, vector<216x16xbf16>, vector<64x16xf32> -> vector<64x16xf32>
    %c0_21 = arith.constant 0 : index
    %c0_22 = arith.constant 0 : index
    %41 = vector.load %arg7[%c0_21, %c0_22] : memref<1x16xf32, #tpu.memory_space<vmem>>, vector<1x16xf32>
    %42 = vector.broadcast %41 : vector<1x16xf32> to vector<64x16xf32>
    %43 = arith.addf %40, %42 : vector<64x16xf32>
    %cst_23 = arith.constant 0.000000e+00 : f32
    %44 = vector.broadcast %cst_23 : f32 to vector<64x16xf32>
    %45 = arith.maximumf %43, %44 : vector<64x16xf32>
    %46 = arith.truncf %45 : vector<64x16xf32> to vector<64x16xbf16>
    %c0_24 = arith.constant 0 : index
    %c0_25 = arith.constant 0 : index
    %c0_26 = arith.constant 0 : index
    %c0_27 = arith.constant 0 : index
    %47 = vector.load %arg8[%c0_24, %c0_25, %c0_26, %c0_27] : memref<1x1x64x16xbf16, #tpu.memory_space<vmem>>, vector<1x1x64x16xbf16>
    %48 = vector.shape_cast %47 : vector<1x1x64x16xbf16> to vector<64x16xbf16>
    %49 = vector.shape_cast %46 : vector<64x16xbf16> to vector<1x1x64x16xbf16>
    tpu.vector_store %arg8[%c0_24, %c0_25, %c0_26, %c0_27], %49 {strides = array<i32>} : memref<1x1x64x16xbf16, #tpu.memory_space<vmem>>, vector<1x1x64x16xbf16>,
    return
  }
  func.func @transform_0(%arg0: i32, %arg1: i32) -> (i32, i32, i32, i32, i32) {
    %c0_i32 = arith.constant 0 : i32
    %c0_i32_0 = arith.constant 0 : i32
    %c0_i32_1 = arith.constant 0 : i32
    %c0_i32_2 = arith.constant 0 : i32
    return %arg0, %arg1, %c0_i32, %c0_i32_0, %c0_i32_1 : i32, i32, i32, i32, i32
  }
  func.func @transform_1(%arg0: i32, %arg1: i32) -> (i32, i32, i32, i32, i32) {
    %c0_i32 = arith.constant 0 : i32
    %c0_i32_0 = arith.constant 0 : i32
    %c0_i32_1 = arith.constant 0 : i32
    %c0_i32_2 = arith.constant 0 : i32
    return %arg0, %arg1, %c0_i32, %c0_i32_0, %c0_i32_1 : i32, i32, i32, i32, i32
  }
  func.func @transform_2(%arg0: i32, %arg1: i32) -> (i32, i32, i32, i32, i32) {
    %c0_i32 = arith.constant 0 : i32
    %c0_i32_0 = arith.constant 0 : i32
    %c0_i32_1 = arith.constant 0 : i32
    %c0_i32_2 = arith.constant 0 : i32
    return %arg0, %arg1, %c0_i32, %c0_i32_0, %c0_i32_1 : i32, i32, i32, i32, i32
  }
  func.func @transform_3(%arg0: i32, %arg1: i32) -> (i32, i32, i32, i32, i32) {
    %c0_i32 = arith.constant 0 : i32
    %c0_i32_0 = arith.constant 0 : i32
    %c0_i32_1 = arith.constant 0 : i32
    %c0_i32_2 = arith.constant 0 : i32
    return %arg0, %arg1, %c0_i32, %c0_i32_0, %c0_i32_1 : i32, i32, i32, i32, i32
  }
  func.func @transform_4(%arg0: i32, %arg1: i32) -> (i32, i32) {
    %c0_i32 = arith.constant 0 : i32
    %c0_i32_0 = arith.constant 0 : i32
    %c0_i32_1 = arith.constant 0 : i32
    return %c0_i32, %c0_i32_0 : i32, i32
  }
  func.func @transform_5(%arg0: i32, %arg1: i32) -> (i32, i32) {
    %c0_i32 = arith.constant 0 : i32
    %c0_i32_0 = arith.constant 0 : i32
    %c0_i32_1 = arith.constant 0 : i32
    return %c0_i32, %c0_i32_0 : i32, i32
  }
  func.func @transform_6(%arg0: i32, %arg1: i32) -> (i32, i32, i32, i32) {
    %c0_i32 = arith.constant 0 : i32
    %c0_i32_0 = arith.constant 0 : i32
    %c0_i32_1 = arith.constant 0 : i32
    return %arg0, %arg1, %c0_i32, %c0_i32_0 : i32, i32, i32, i32
  }
}

</mosaic_0001>

<llo_original>
// kernel: tpu_custom_call.1
$region0: #{tpu_custom_call.1}
  #allocation0 [shape = 'u32[]', space=smem, size = 0x4, offset = 0x4, fixed_abs, tag = 'smem constant byte address 0x4 - core index']
  #allocation1 [shape = 'u32[72,128]{1,0:T(1,128)}', space=vmem, size = 0x9000, scoped, tag = 'internal scratch']
  %s0 = inlined_call_operand.vmem [shape: bf16[2,6,5,5,8], index: 0, kind: input, shape index: {}]
  %s1 = inlined_call_operand.vmem [shape: bf16[2,6,5,5,8], index: 1, kind: input, shape index: {}]
  %s2 = inlined_call_operand.vmem [shape: bf16[2,6,5,5,8], index: 2, kind: input, shape index: {}]
  %s3 = inlined_call_operand.vmem [shape: bf16[2,6,5,5,8], index: 3, kind: input, shape index: {}]
  %s4 = inlined_call_operand.vmem [shape: bf16[216,16], index: 4, kind: input, shape index: {}]
  %s5 = inlined_call_operand.vmem [shape: f32[1,16], index: 5, kind: input, shape index: {}]
  %s6 = inlined_call_operand.vmem [shape: bf16[2,1,64,16], index: 6, kind: output, shape index: {}]
  %s7 = sld [smem:[#allocation0]]
  $region57: #{tpu_custom_call.1} parent=0
    _
  %s9 = ssub.s32 1, %s7
  %s10 = scalar_select 0, %s9, %s7
  loop: start=0, step=1, limit=4
  $region2: #{tpu_custom_call.1} parent=0 // loop_pre_header
    _
  $region3: #{tpu_custom_call.1} parent=0 // loop_header
    %s12 = sphi 0, %s16
    %p13 = scmp.ge.s32.totalorder %s12, 4
    %s19 = sphi 0, %s31
    %s20 = sphi 0, %s27
    %s21 = sphi 0, %s19
    %s22 = sphi 0, %s20
    %s23 = sphi 0, %s21
    %s24 = sphi 0, %s22
    %s36 = sphi 0, %s38
    %s39 = sphi 0, %s36
    %s40 = sphi 0, %s39
    %s56 = sphi 0, %s40
    %s64 = sphi 0, %s66
    %s67 = sphi 0, %s64
    %s68 = sphi 0, %s67
    %s84 = sphi 0, %s68
    %s92 = sphi 0, %s94
    %s95 = sphi 0, %s92
    %s96 = sphi 0, %s95
    %s112 = sphi 0, %s96
    %s120 = sphi 0, %s122
    %s123 = sphi 0, %s120
    %s124 = sphi 0, %s123
    %s140 = sphi 0, %s124
    %s144 = sphi 0, %s144
    %s146 = sphi 0, %s144
    %s147 = sphi 0, %s146
    %s161 = sphi 0, %s147
    %s165 = sphi 0, %s165
    %s167 = sphi 0, %s165
    %s168 = sphi 0, %s167
    %s182 = sphi 0, %s168
    %s190 = sphi 0, %s192
    %s193 = sphi 0, %s190
    %s194 = sphi 0, %s193
    %s210 = sphi 0, %s194
  $region4: #{tpu_custom_call.1} parent=0 // loop_header_branch
    %15 = sbr.rel (%p13) target = $region8
  $region5: #{tpu_custom_call.1} parent=0 // loop_body
    %s17 = ssub.s32 %s12, 1
    %s18 = ssub.s32 %s12, 2
    %s25 = sadd.s32 1, %s20
    %p26 = scmp.ge.s32.totalorder %s25, 1
    %s27 = scalar_select %p26, 0, %s25
    %s28 = sadd.s32 1, %s19
    %s29 = scalar_select %p26, %s28, %s19
    %p30 = scmp.ge.s32.totalorder %s29, 2
    %s31 = scalar_select %p30, 0, %s29
    %s32 = ssub.s32 %s19, %s31
    %s33 = ssub.s32 %s20, %s27
    %s34 = sor.u32 %s32, %s33
    %p35 = scmp.eq.s32.totalorder %s34, 0
    %s37 = sadd.s32 %s36, 1
    %s38 = scalar_select %p35, %s36, %s37
    %p41 = pneg %p35
    %p42 = scmp.eq.s32.totalorder %s12, 1
    %p43 = por %p41, %p42
    %p44 = scmp.ne.s32.totalorder %s36, %s39
    %p45 = scmp.eq.s32.totalorder %s12, 0
    %p46 = por %p44, %p45
    %p47 = scmp.ne.s32.totalorder %s36, %s39
    %p48 = scmp.eq.s32.totalorder %s17, 1
    %p49 = por %p47, %p48
    %p50 = scmp.ne.s32.totalorder %s39, %s40
    %p51 = scmp.eq.s32.totalorder %s17, 0
    %p52 = por %p50, %p51
    %p53 = scmp.ne.s32.totalorder %s39, %s40
    %p54 = scmp.eq.s32.totalorder %s18, 1
    %p55 = por %p53, %p54
    %p57 = scmp.ne.s32.totalorder %s40, %s56
    %p58 = scmp.eq.s32.totalorder %s18, 0
    %p59 = por %p57, %p58
    %s60 = ssub.s32 %s19, %s31
    %s61 = ssub.s32 %s20, %s27
    %s62 = sor.u32 %s60, %s61
    %p63 = scmp.eq.s32.totalorder %s62, 0
    %s65 = sadd.s32 %s64, 1
    %s66 = scalar_select %p63, %s64, %s65
    %p69 = pneg %p63
    %p70 = scmp.eq.s32.totalorder %s12, 1
    %p71 = por %p69, %p70
    %p72 = scmp.ne.s32.totalorder %s64, %s67
    %p73 = scmp.eq.s32.totalorder %s12, 0
    %p74 = por %p72, %p73
    %p75 = scmp.ne.s32.totalorder %s64, %s67
    %p76 = scmp.eq.s32.totalorder %s17, 1
    %p77 = por %p75, %p76
    %p78 = scmp.ne.s32.totalorder %s67, %s68
    %p79 = scmp.eq.s32.totalorder %s17, 0
    %p80 = por %p78, %p79
    %p81 = scmp.ne.s32.totalorder %s67, %s68
    %p82 = scmp.eq.s32.totalorder %s18, 1
    %p83 = por %p81, %p82
    %p85 = scmp.ne.s32.totalorder %s68, %s84
    %p86 = scmp.eq.s32.totalorder %s18, 0
    %p87 = por %p85, %p86
    %s88 = ssub.s32 %s19, %s31
    %s89 = ssub.s32 %s20, %s27
    %s90 = sor.u32 %s88, %s89
    %p91 = scmp.eq.s32.totalorder %s90, 0
    %s93 = sadd.s32 %s92, 1
    %s94 = scalar_select %p91, %s92, %s93
    %p97 = pneg %p91
    %p98 = scmp.eq.s32.totalorder %s12, 1
    %p99 = por %p97, %p98
    %p100 = scmp.ne.s32.totalorder %s92, %s95
    %p101 = scmp.eq.s32.totalorder %s12, 0
    %p102 = por %p100, %p101
    %p103 = scmp.ne.s32.totalorder %s92, %s95
    %p104 = scmp.eq.s32.totalorder %s17, 1
    %p105 = por %p103, %p104
    %p106 = scmp.ne.s32.totalorder %s95, %s96
    %p107 = scmp.eq.s32.totalorder %s17, 0
    %p108 = por %p106, %p107
    %p109 = scmp.ne.s32.totalorder %s95, %s96
    %p110 = scmp.eq.s32.totalorder %s18, 1
    %p111 = por %p109, %p110
    %p113 = scmp.ne.s32.totalorder %s96, %s112
    %p114 = scmp.eq.s32.totalorder %s18, 0
    %p115 = por %p113, %p114
    %s116 = ssub.s32 %s19, %s31
    %s117 = ssub.s32 %s20, %s27
    %s118 = sor.u32 %s116, %s117
    %p119 = scmp.eq.s32.totalorder %s118, 0
    %s121 = sadd.s32 %s120, 1
    %s122 = scalar_select %p119, %s120, %s121
    %p125 = pneg %p119
    %p126 = scmp.eq.s32.totalorder %s12, 1
    %p127 = por %p125, %p126
    %p128 = scmp.ne.s32.totalorder %s120, %s123
    %p129 = scmp.eq.s32.totalorder %s12, 0
    %p130 = por %p128, %p129
    %p131 = scmp.ne.s32.totalorder %s120, %s123
    %p132 = scmp.eq.s32.totalorder %s17, 1
    %p133 = por %p131, %p132
    %p134 = scmp.ne.s32.totalorder %s123, %s124
    %p135 = scmp.eq.s32.totalorder %s17, 0
    %p136 = por %p134, %p135
    %p137 = scmp.ne.s32.totalorder %s123, %s124
    %p138 = scmp.eq.s32.totalorder %s18, 1
    %p139 = por %p137, %p138
    %p141 = scmp.ne.s32.totalorder %s124, %s140
    %p142 = scmp.eq.s32.totalorder %s18, 0
    %p143 = por %p141, %p142
    %s145 = sadd.s32 %s144, 1
    %p148 = scmp.eq.s32.totalorder %s12, 1
    %p149 = scmp.ne.s32.totalorder %s144, %s146
    %p150 = scmp.eq.s32.totalorder %s12, 0
    %p151 = por %p149, %p150
    %p152 = scmp.ne.s32.totalorder %s144, %s146
    %p153 = scmp.eq.s32.totalorder %s17, 1
    %p154 = por %p152, %p153
    %p155 = scmp.ne.s32.totalorder %s146, %s147
    %p156 = scmp.eq.s32.totalorder %s17, 0
    %p157 = por %p155, %p156
    %p158 = scmp.ne.s32.totalorder %s146, %s147
    %p159 = scmp.eq.s32.totalorder %s18, 1
    %p160 = por %p158, %p159
    %p162 = scmp.ne.s32.totalorder %s147, %s161
    %p163 = scmp.eq.s32.totalorder %s18, 0
    %p164 = por %p162, %p163
    %s166 = sadd.s32 %s165, 1
    %p169 = scmp.eq.s32.totalorder %s12, 1
    %p170 = scmp.ne.s32.totalorder %s165, %s167
    %p171 = scmp.eq.s32.totalorder %s12, 0
    %p172 = por %p170, %p171
    %p173 = scmp.ne.s32.totalorder %s165, %s167
    %p174 = scmp.eq.s32.totalorder %s17, 1
    %p175 = por %p173, %p174
    %p176 = scmp.ne.s32.totalorder %s167, %s168
    %p177 = scmp.eq.s32.totalorder %s17, 0
    %p178 = por %p176, %p177
    %p179 = scmp.ne.s32.totalorder %s167, %s168
    %p180 = scmp.eq.s32.totalorder %s18, 1
    %p181 = por %p179, %p180
    %p183 = scmp.ne.s32.totalorder %s168, %s182
    %p184 = scmp.eq.s32.totalorder %s18, 0
    %p185 = por %p183, %p184
    %s186 = ssub.s32 %s19, %s31
    %s187 = ssub.s32 %s20, %s27
    %s188 = sor.u32 %s186, %s187
    %p189 = scmp.eq.s32.totalorder %s188, 0
    %s191 = sadd.s32 %s190, 1
    %s192 = scalar_select %p189, %s190, %s191
    %p195 = pneg %p189
    %p196 = scmp.eq.s32.totalorder %s12, 1
    %p197 = por %p195, %p196
    %p198 = scmp.ne.s32.totalorder %s190, %s193
    %p199 = scmp.eq.s32.totalorder %s12, 0
    %p200 = por %p198, %p199
    %p201 = scmp.ne.s32.totalorder %s190, %s193
    %p202 = scmp.eq.s32.totalorder %s17, 1
    %p203 = por %p201, %p202
    %p204 = scmp.ne.s32.totalorder %s193, %s194
    %p205 = scmp.eq.s32.totalorder %s17, 0
    %p206 = por %p204, %p205
    %p207 = scmp.ne.s32.totalorder %s193, %s194
    %p208 = scmp.eq.s32.totalorder %s18, 1
    %p209 = por %p207, %p208
    %p211 = scmp.ne.s32.totalorder %s194, %s210
    %p212 = scmp.eq.s32.totalorder %s18, 0
    %p213 = por %p211, %p212
    %p214 = scmp.le.s32.totalorder 1, %s12
    %p215 = scmp.lt.s32.totalorder %s12, 3
    %p216 = pnand %p214, %p215
    %p217 = pneg %p216
    // Predicated region
    $region9: #{tpu_custom_call.1} parent=5 // pred_check
      _
    $region10: #{tpu_custom_call.1} parent=5 // pred_check_branch
      %219 = sbr.rel (%p216) target = $region12
    $region11: #{tpu_custom_call.1} parent=5 // pred_region
      %s220 = ssub.s32 %s12, 1
      // Predicated region
      $region13: #{tpu_custom_call.1} parent=11 // pred_check
        %p221 = pneg %p157
      $region14: #{tpu_custom_call.1} parent=11 // pred_check_branch
        %223 = sbr.rel (%p221) target = $region16
      $region15: #{tpu_custom_call.1} parent=11 // pred_region
        _
      $region16: #{tpu_custom_call.1} parent=11 // pred_fallthru
        _
      // Predicated region
      $region17: #{tpu_custom_call.1} parent=11 // pred_check
        %p224 = pneg %p178
      $region18: #{tpu_custom_call.1} parent=11 // pred_check_branch
        %226 = sbr.rel (%p224) target = $region20
      $region19: #{tpu_custom_call.1} parent=11 // pred_region
        _
      $region20: #{tpu_custom_call.1} parent=11 // pred_fallthru
        _
    $region12: #{tpu_custom_call.1} parent=5 // pred_fallthru
      _
    %p227 = scmp.lt.s32.totalorder %s12, 2
    // Predicated region
    $region21: #{tpu_custom_call.1} parent=5 // pred_check
      %p228 = pneg %p227
    $region22: #{tpu_custom_call.1} parent=5 // pred_check_branch
      %230 = sbr.rel (%p228) target = $region24
    $region23: #{tpu_custom_call.1} parent=5 // pred_region
      // Predicated region
      $region25: #{tpu_custom_call.1} parent=23 // pred_check
        %p231 = pneg %p46
      $region26: #{tpu_custom_call.1} parent=23 // pred_check_branch
        %233 = sbr.rel (%p231) target = $region28
      $region27: #{tpu_custom_call.1} parent=23 // pred_region
        %s234 = smul.u32 6, %s20
        %p235 = scmp.lt.s32.totalorder %s19, 1
        %s236 = scalar_select %p235, %s19, 1
        %p237 = scmp.lt.s32.totalorder %s234, 5
        %s238 = scalar_select %p237, %s234, 5
        %s239 = smul.addr %s238, 5
        %s240 = smul.addr %s236, 30
        %s241 = sadd.s32 %s239, %s240
        %s242 = smul.addr %s241, 4
        %s243 = scalar_lea.vmem %s0, %s242
        %s244 = smul.u32 6, %s20
      $region28: #{tpu_custom_call.1} parent=23 // pred_fallthru
        _
      // Predicated region
      $region29: #{tpu_custom_call.1} parent=23 // pred_check
        %p245 = pneg %p74
      $region30: #{tpu_custom_call.1} parent=23 // pred_check_branch
        %247 = sbr.rel (%p245) target = $region32
      $region31: #{tpu_custom_call.1} parent=23 // pred_region
        %s248 = smul.u32 6, %s20
        %p249 = scmp.lt.s32.totalorder %s19, 1
        %s250 = scalar_select %p249, %s19, 1
        %p251 = scmp.lt.s32.totalorder %s248, 5
        %s252 = scalar_select %p251, %s248, 5
        %s253 = smul.addr %s252, 5
        %s254 = smul.addr %s250, 30
        %s255 = sadd.s32 %s253, %s254
        %s256 = smul.addr %s255, 4
        %s257 = scalar_lea.vmem %s1, %s256
        %s258 = smul.u32 6, %s20
      $region32: #{tpu_custom_call.1} parent=23 // pred_fallthru
        _
      // Predicated region
      $region33: #{tpu_custom_call.1} parent=23 // pred_check
        %p259 = pneg %p102
      $region34: #{tpu_custom_call.1} parent=23 // pred_check_branch
        %261 = sbr.rel (%p259) target = $region36
      $region35: #{tpu_custom_call.1} parent=23 // pred_region
        %s262 = smul.u32 6, %s20
        %p263 = scmp.lt.s32.totalorder %s19, 1
        %s264 = scalar_select %p263, %s19, 1
        %p265 = scmp.lt.s32.totalorder %s262, 5
        %s266 = scalar_select %p265, %s262, 5
        %s267 = smul.addr %s266, 5
        %s268 = smul.addr %s264, 30
        %s269 = sadd.s32 %s267, %s268
        %s270 = smul.addr %s269, 4
        %s271 = scalar_lea.vmem %s2, %s270
        %s272 = smul.u32 6, %s20
      $region36: #{tpu_custom_call.1} parent=23 // pred_fallthru
        _
      // Predicated region
      $region37: #{tpu_custom_call.1} parent=23 // pred_check
        %p273 = pneg %p130
      $region38: #{tpu_custom_call.1} parent=23 // pred_check_branch
        %275 = sbr.rel (%p273) target = $region40
      $region39: #{tpu_custom_call.1} parent=23 // pred_region
        %s276 = smul.u32 6, %s20
        %p277 = scmp.lt.s32.totalorder %s19, 1
        %s278 = scalar_select %p277, %s19, 1
        %p279 = scmp.lt.s32.totalorder %s276, 5
        %s280 = scalar_select %p279, %s276, 5
        %s281 = smul.addr %s280, 5
        %s282 = smul.addr %s278, 30
        %s283 = sadd.s32 %s281, %s282
        %s284 = smul.addr %s283, 4
        %s285 = scalar_lea.vmem %s3, %s284
        %s286 = smul.u32 6, %s20
      $region40: #{tpu_custom_call.1} parent=23 // pred_fallthru
        _
    $region24: #{tpu_custom_call.1} parent=5 // pred_fallthru
      _
    %p287 = scmp.le.s32.totalorder 1, %s12
    %p288 = scmp.lt.s32.totalorder %s12, 3
    %p289 = pnand %p287, %p288
    %p290 = pneg %p289
    // Predicated region
    $region41: #{tpu_custom_call.1} parent=5 // pred_check
      _
    $region42: #{tpu_custom_call.1} parent=5 // pred_check_branch
      %292 = sbr.rel (%p289) target = $region44
    $region43: #{tpu_custom_call.1} parent=5 // pred_region
      %s293 = ssub.s32 %s12, 1
      %s294 = smul.u32 6, %s22
      %p295 = scmp.lt.s32.totalorder %s21, 1
      %s296 = scalar_select %p295, %s21, 1
      %p297 = scmp.lt.s32.totalorder %s294, 5
      %s298 = scalar_select %p297, %s294, 5
      %s299 = smul.addr %s298, 5
      %s300 = smul.addr %s296, 30
      %s301 = sadd.s32 %s299, %s300
      %s302 = smul.addr %s301, 4
      %s303 = scalar_lea.vmem %s0, %s302
      %p304 = pneg %p52
      %p305 = pneg %p49
      %s306 = smul.u32 6, %s22
      %p307 = scmp.lt.s32.totalorder %s21, 1
      %s308 = scalar_select %p307, %s21, 1
      %p309 = scmp.lt.s32.totalorder %s306, 5
      %s310 = scalar_select %p309, %s306, 5
      %s311 = smul.addr %s310, 5
      %s312 = smul.addr %s308, 30
      %s313 = sadd.s32 %s311, %s312
      %s314 = smul.addr %s313, 4
      %s315 = scalar_lea.vmem %s1, %s314
      %p316 = pneg %p80
      %p317 = pneg %p77
      %s318 = smul.u32 6, %s22
      %p319 = scmp.lt.s32.totalorder %s21, 1
      %s320 = scalar_select %p319, %s21, 1
      %p321 = scmp.lt.s32.totalorder %s318, 5
      %s322 = scalar_select %p321, %s318, 5
      %s323 = smul.addr %s322, 5
      %s324 = smul.addr %s320, 30
      %s325 = sadd.s32 %s323, %s324
      %s326 = smul.addr %s325, 4
      %s327 = scalar_lea.vmem %s2, %s326
      %p328 = pneg %p108
      %p329 = pneg %p105
      %s330 = smul.u32 6, %s22
      %p331 = scmp.lt.s32.totalorder %s21, 1
      %s332 = scalar_select %p331, %s21, 1
      %p333 = scmp.lt.s32.totalorder %s330, 5
      %s334 = scalar_select %p333, %s330, 5
      %s335 = smul.addr %s334, 5
      %s336 = smul.addr %s332, 30
      %s337 = sadd.s32 %s335, %s336
      %s338 = smul.addr %s337, 4
      %s339 = scalar_lea.vmem %s3, %s338
      %p340 = pneg %p136
      %p341 = pneg %p133
      %p342 = pneg %p157
      %p343 = pneg %p154
      %p344 = pneg %p178
      %p345 = pneg %p175
      %p346 = pneg %p206
      %p347 = pneg %p203
      %p348 = scmp.lt.s32.totalorder %s21, 1
      %s349 = scalar_select %p348, %s21, 1
      %p350 = scmp.lt.s32.totalorder %s22, 0
      %s351 = scalar_select %p350, %s22, 0
      %s352 = smul.addr %s351, 8
      %s353 = smul.addr %s349, 8
      %s354 = sadd.s32 %s352, %s353
      %s355 = smul.addr %s354, 4
      %s356 = scalar_lea.vmem %s6, %s355
      %s357 = smul.u32 6, %s22
      %p358 = scmp.lt.s32.totalorder %s21, 1
      %s359 = scalar_select %p358, %s21, 1
      %p360 = scmp.lt.s32.totalorder %s357, 5
      %s361 = scalar_select %p360, %s357, 5
      %s362 = smul.addr %s361, 5
      %s363 = smul.addr %s359, 30
      %s364 = sadd.s32 %s362, %s363
      %s365 = smul.addr %s364, 4
      %s366 = scalar_lea.vmem %s0, %s365
      %s367 = smul.u32 6, %s22
      %s368 = smul.u32 6, %s22
      %p369 = scmp.lt.s32.totalorder %s21, 1
      %s370 = scalar_select %p369, %s21, 1
      %p371 = scmp.lt.s32.totalorder %s368, 5
      %s372 = scalar_select %p371, %s368, 5
      %s373 = smul.addr %s372, 5
      %s374 = smul.addr %s370, 30
      %s375 = sadd.s32 %s373, %s374
      %s376 = smul.addr %s375, 4
      %s377 = scalar_lea.vmem %s1, %s376
      %s378 = smul.u32 6, %s22
      %s379 = smul.u32 6, %s22
      %p380 = scmp.lt.s32.totalorder %s21, 1
      %s381 = scalar_select %p380, %s21, 1
      %p382 = scmp.lt.s32.totalorder %s379, 5
      %s383 = scalar_select %p382, %s379, 5
      %s384 = smul.addr %s383, 5
      %s385 = smul.addr %s381, 30
      %s386 = sadd.s32 %s384, %s385
      %s387 = smul.addr %s386, 4
      %s388 = scalar_lea.vmem %s2, %s387
      %s389 = smul.u32 6, %s22
      %s390 = smul.u32 6, %s22
      %p391 = scmp.lt.s32.totalorder %s21, 1
      %s392 = scalar_select %p391, %s21, 1
      %p393 = scmp.lt.s32.totalorder %s390, 5
      %s394 = scalar_select %p393, %s390, 5
      %s395 = smul.addr %s394, 5
      %s396 = smul.addr %s392, 30
      %s397 = sadd.s32 %s395, %s396
      %s398 = smul.addr %s397, 4
      %s399 = scalar_lea.vmem %s3, %s398
      %s400 = smul.u32 6, %s22
      %p401 = scmp.lt.s32.totalorder %s21, 1
      %s402 = scalar_select %p401, %s21, 1
      %p403 = scmp.lt.s32.totalorder %s22, 0
      %s404 = scalar_select %p403, %s22, 0
      %s405 = smul.addr %s404, 8
      %s406 = smul.addr %s402, 8
      %s407 = sadd.s32 %s405, %s406
      %s408 = smul.addr %s407, 4
      %s409 = scalar_lea.vmem %s6, %s408
      %v411 = vld [vmem:[%s366] sm:$0x7]
      %v412 = vld [vmem:[%s366 + $0x4] sm:$0x7]
      %v413 = vld [vmem:[%s366 + $0x8] sm:$0x7]
      %v414 = vld [vmem:[%s366 + $0xc] sm:$0x7]
      %v415 = vld [vmem:[%s366 + $0x10] sm:$0x7]
      %v416 = vld [vmem:[%s366 + $0x14] sm:$0x7]
      %v417 = vld [vmem:[%s366 + $0x18] sm:$0x7]
      %v418 = vld [vmem:[%s366 + $0x1c] sm:$0x7]
      %v419 = vld [vmem:[%s366 + $0x20] sm:$0x7]
      %v420 = vld [vmem:[%s366 + $0x24] sm:$0x7]
      %v421 = vld [vmem:[%s366 + $0x28] sm:$0x7]
      %v422 = vld [vmem:[%s366 + $0x2c] sm:$0x7]
      %v423 = vld [vmem:[%s366 + $0x30] sm:$0x7]
      %v424 = vld [vmem:[%s366 + $0x34] sm:$0x7]
      %v425 = vld [vmem:[%s366 + $0x38] sm:$0x7]
      %v426 = vld [vmem:[%s366 + $0x3c] sm:$0x7]
      %v427 = vld [vmem:[%s366 + $0x40] sm:$0x7]
      %v428 = vld [vmem:[%s366 + $0x44] sm:$0x7]
      %v429 = vld [vmem:[%s366 + $0x48] sm:$0x7]
      %v430 = vld [vmem:[%s366 + $0x4c] sm:$0x7]
      %v431 = vld [vmem:[%s366 + $0x50] sm:$0x7]
      %v432 = vld [vmem:[%s366 + $0x54] sm:$0x7]
      %v433 = vld [vmem:[%s366 + $0x58] sm:$0x7]
      %v434 = vld [vmem:[%s366 + $0x5c] sm:$0x7]
      %v435 = vld [vmem:[%s366 + $0x60] sm:$0x7]
      %v436 = vld [vmem:[%s366 + $0x64] sm:$0x7]
      %v437 = vld [vmem:[%s366 + $0x68] sm:$0x7]
      %v438 = vld [vmem:[%s366 + $0x6c] sm:$0x7]
      %v439 = vld [vmem:[%s366 + $0x70] sm:$0x7]
      %v440 = vld [vmem:[%s366 + $0x74] sm:$0x7]
      %v441 = vld [vmem:[%s377] sm:$0x7]
      %v442 = vld [vmem:[%s377 + $0x4] sm:$0x7]
      %v443 = vld [vmem:[%s377 + $0x8] sm:$0x7]
      %v444 = vld [vmem:[%s377 + $0xc] sm:$0x7]
      %v445 = vld [vmem:[%s377 + $0x10] sm:$0x7]
      %v446 = vld [vmem:[%s377 + $0x14] sm:$0x7]
      %v447 = vld [vmem:[%s377 + $0x18] sm:$0x7]
      %v448 = vld [vmem:[%s377 + $0x1c] sm:$0x7]
      %v449 = vld [vmem:[%s377 + $0x20] sm:$0x7]
      %v450 = vld [vmem:[%s377 + $0x24] sm:$0x7]
      %v451 = vld [vmem:[%s377 + $0x28] sm:$0x7]
      %v452 = vld [vmem:[%s377 + $0x2c] sm:$0x7]
      %v453 = vld [vmem:[%s377 + $0x30] sm:$0x7]
      %v454 = vld [vmem:[%s377 + $0x34] sm:$0x7]
      %v455 = vld [vmem:[%s377 + $0x38] sm:$0x7]
      %v456 = vld [vmem:[%s377 + $0x3c] sm:$0x7]
      %v457 = vld [vmem:[%s377 + $0x40] sm:$0x7]
      %v458 = vld [vmem:[%s377 + $0x44] sm:$0x7]
      %v459 = vld [vmem:[%s377 + $0x48] sm:$0x7]
      %v460 = vld [vmem:[%s377 + $0x4c] sm:$0x7]
      %v461 = vld [vmem:[%s377 + $0x50] sm:$0x7]
      %v462 = vld [vmem:[%s377 + $0x54] sm:$0x7]
      %v463 = vld [vmem:[%s377 + $0x58] sm:$0x7]
      %v464 = vld [vmem:[%s377 + $0x5c] sm:$0x7]
      %v465 = vld [vmem:[%s377 + $0x60] sm:$0x7]
      %v466 = vld [vmem:[%s377 + $0x64] sm:$0x7]
      %v467 = vld [vmem:[%s377 + $0x68] sm:$0x7]
      %v468 = vld [vmem:[%s377 + $0x6c] sm:$0x7]
      %v469 = vld [vmem:[%s377 + $0x70] sm:$0x7]
      %v470 = vld [vmem:[%s377 + $0x74] sm:$0x7]
      %v471 = vld [vmem:[%s388] sm:$0x7]
      %v472 = vld [vmem:[%s388 + $0x4] sm:$0x7]
      %v473 = vld [vmem:[%s388 + $0x8] sm:$0x7]
      %v474 = vld [vmem:[%s388 + $0xc] sm:$0x7]
      %v475 = vld [vmem:[%s388 + $0x14] sm:$0x7]
      %v476 = vld [vmem:[%s388 + $0x18] sm:$0x7]
      %v477 = vld [vmem:[%s388 + $0x1c] sm:$0x7]
      %v478 = vld [vmem:[%s388 + $0x20] sm:$0x7]
      %v479 = vld [vmem:[%s388 + $0x28] sm:$0x7]
      %v480 = vld [vmem:[%s388 + $0x2c] sm:$0x7]
      %v481 = vld [vmem:[%s388 + $0x30] sm:$0x7]
      %v482 = vld [vmem:[%s388 + $0x34] sm:$0x7]
      %v483 = vld [vmem:[%s388 + $0x3c] sm:$0x7]
      %v484 = vld [vmem:[%s388 + $0x40] sm:$0x7]
      %v485 = vld [vmem:[%s388 + $0x44] sm:$0x7]
      %v486 = vld [vmem:[%s388 + $0x48] sm:$0x7]
      %v487 = vld [vmem:[%s388 + $0x50] sm:$0x7]
      %v488 = vld [vmem:[%s388 + $0x54] sm:$0x7]
      %v489 = vld [vmem:[%s388 + $0x58] sm:$0x7]
      %v490 = vld [vmem:[%s388 + $0x5c] sm:$0x7]
      %v491 = vld [vmem:[%s388 + $0x64] sm:$0x7]
      %v492 = vld [vmem:[%s388 + $0x68] sm:$0x7]
      %v493 = vld [vmem:[%s388 + $0x6c] sm:$0x7]
      %v494 = vld [vmem:[%s388 + $0x70] sm:$0x7]
      %v495 = vld [vmem:[%s399] sm:$0x7]
      %v496 = vld [vmem:[%s399 + $0x4] sm:$0x7]
      %v497 = vld [vmem:[%s399 + $0x8] sm:$0x7]
      %v498 = vld [vmem:[%s399 + $0xc] sm:$0x7]
      %v499 = vld [vmem:[%s399 + $0x14] sm:$0x7]
      %v500 = vld [vmem:[%s399 + $0x18] sm:$0x7]
      %v501 = vld [vmem:[%s399 + $0x1c] sm:$0x7]
      %v502 = vld [vmem:[%s399 + $0x20] sm:$0x7]
      %v503 = vld [vmem:[%s399 + $0x28] sm:$0x7]
      %v504 = vld [vmem:[%s399 + $0x2c] sm:$0x7]
      %v505 = vld [vmem:[%s399 + $0x30] sm:$0x7]
      %v506 = vld [vmem:[%s399 + $0x34] sm:$0x7]
      %v507 = vld [vmem:[%s399 + $0x3c] sm:$0x7]
      %v508 = vld [vmem:[%s399 + $0x40] sm:$0x7]
      %v509 = vld [vmem:[%s399 + $0x44] sm:$0x7]
      %v510 = vld [vmem:[%s399 + $0x48] sm:$0x7]
      %v511 = vld [vmem:[%s399 + $0x50] sm:$0x7]
      %v512 = vld [vmem:[%s399 + $0x54] sm:$0x7]
      %v513 = vld [vmem:[%s399 + $0x58] sm:$0x7]
      %v514 = vld [vmem:[%s399 + $0x5c] sm:$0x7]
      %v515 = vld [vmem:[%s399 + $0x64] sm:$0x7]
      %v516 = vld [vmem:[%s399 + $0x68] sm:$0x7]
      %v517 = vld [vmem:[%s399 + $0x6c] sm:$0x7]
      %v518 = vld [vmem:[%s399 + $0x70] sm:$0x7]
      %v535 = vunpack.c.l.b16 %v441
      %v536 = vunpack.c.l.b16 %v442
      %v537 = vunpack.c.l.b16 %v443
      %v538 = vunpack.c.l.b16 %v444
      %v539 = vunpack.c.l.b16 %v446
      %v540 = vunpack.c.l.b16 %v447
      %v541 = vunpack.c.l.b16 %v448
      %v542 = vunpack.c.l.b16 %v449
      %v543 = vunpack.c.l.b16 %v451
      %v544 = vunpack.c.l.b16 %v452
      %v545 = vunpack.c.l.b16 %v453
      %v546 = vunpack.c.l.b16 %v454
      %v547 = vunpack.c.l.b16 %v456
      %v548 = vunpack.c.l.b16 %v457
      %v549 = vunpack.c.l.b16 %v458
      %v550 = vunpack.c.l.b16 %v459
      %v551 = vpack.c.b16 %v535, %v535
      %v552 = vpack.c.b16 %v536, %v536
      %v553 = vpack.c.b16 %v537, %v537
      %v554 = vpack.c.b16 %v538, %v538
      %v555 = vpack.c.b16 %v539, %v539
      %v556 = vpack.c.b16 %v540, %v540
      %v557 = vpack.c.b16 %v541, %v541
      %v558 = vpack.c.b16 %v542, %v542
      %v559 = vpack.c.b16 %v543, %v543
      %v560 = vpack.c.b16 %v544, %v544
      %v561 = vpack.c.b16 %v545, %v545
      %v562 = vpack.c.b16 %v546, %v546
      %v563 = vpack.c.b16 %v547, %v547
      %v564 = vpack.c.b16 %v548, %v548
      %v565 = vpack.c.b16 %v549, %v549
      %v566 = vpack.c.b16 %v550, %v550
      %567 = vrot.lane.b32.xlu0 %v551, 8
      %v568 = vpop.permute.xlu0 %567
      %569 = vrot.lane.b32.xlu0 %v552, 8
      %v570 = vpop.permute.xlu0 %569
      %571 = vrot.lane.b32.xlu0 %v553, 8
      %v572 = vpop.permute.xlu0 %571
      %573 = vrot.lane.b32.xlu0 %v554, 8
      %v574 = vpop.permute.xlu0 %573
      %575 = vrot.lane.b32.xlu0 %v555, 8
      %v576 = vpop.permute.xlu0 %575
      %577 = vrot.lane.b32.xlu0 %v556, 8
      %v578 = vpop.permute.xlu0 %577
      %579 = vrot.lane.b32.xlu0 %v557, 8
      %v580 = vpop.permute.xlu0 %579
      %581 = vrot.lane.b32.xlu0 %v558, 8
      %v582 = vpop.permute.xlu0 %581
      %583 = vrot.lane.b32.xlu0 %v559, 8
      %v584 = vpop.permute.xlu0 %583
      %585 = vrot.lane.b32.xlu0 %v560, 8
      %v586 = vpop.permute.xlu0 %585
      %587 = vrot.lane.b32.xlu0 %v561, 8
      %v588 = vpop.permute.xlu0 %587
      %589 = vrot.lane.b32.xlu0 %v562, 8
      %v590 = vpop.permute.xlu0 %589
      %591 = vrot.lane.b32.xlu0 %v563, 8
      %v592 = vpop.permute.xlu0 %591
      %593 = vrot.lane.b32.xlu0 %v564, 8
      %v594 = vpop.permute.xlu0 %593
      %595 = vrot.lane.b32.xlu0 %v565, 8
      %v596 = vpop.permute.xlu0 %595
      %597 = vrot.lane.b32.xlu0 %v566, 8
      %v598 = vpop.permute.xlu0 %597
      %v615 = vunpack.c.l.b16 %v411
      %v616 = vunpack.c.l.b16 %v412
      %v617 = vunpack.c.l.b16 %v413
      %v618 = vunpack.c.l.b16 %v414
      %v619 = vunpack.c.l.b16 %v416
      %v620 = vunpack.c.l.b16 %v417
      %v621 = vunpack.c.l.b16 %v418
      %v622 = vunpack.c.l.b16 %v419
      %v623 = vunpack.c.l.b16 %v421
      %v624 = vunpack.c.l.b16 %v422
      %v625 = vunpack.c.l.b16 %v423
      %v626 = vunpack.c.l.b16 %v424
      %v627 = vunpack.c.l.b16 %v426
      %v628 = vunpack.c.l.b16 %v427
      %v629 = vunpack.c.l.b16 %v428
      %v630 = vunpack.c.l.b16 %v429
      %v631 = vpack.c.b16 %v615, %v615
      %v632 = vpack.c.b16 %v616, %v616
      %v633 = vpack.c.b16 %v617, %v617
      %v634 = vpack.c.b16 %v618, %v618
      %v635 = vpack.c.b16 %v619, %v619
      %v636 = vpack.c.b16 %v620, %v620
      %v637 = vpack.c.b16 %v621, %v621
      %v638 = vpack.c.b16 %v622, %v622
      %v639 = vpack.c.b16 %v623, %v623
      %v640 = vpack.c.b16 %v624, %v624
      %v641 = vpack.c.b16 %v625, %v625
      %v642 = vpack.c.b16 %v626, %v626
      %v643 = vpack.c.b16 %v627, %v627
      %v644 = vpack.c.b16 %v628, %v628
      %v645 = vpack.c.b16 %v629, %v629
      %v646 = vpack.c.b16 %v630, %v630
      %v648 = vshrl.u32 %v631, 16
      %v650 = vshll.u32 %v631, 16
      %v652 = vrot.slane %v650, 1
      %v653 = vor.u32 %v648, %v652
      %v655 = vshrl.u32 %v632, 16
      %v657 = vshll.u32 %v632, 16
      %v659 = vrot.slane %v657, 1
      %v660 = vor.u32 %v655, %v659
      %v662 = vshrl.u32 %v633, 16
      %v664 = vshll.u32 %v633, 16
      %v666 = vrot.slane %v664, 1
      %v667 = vor.u32 %v662, %v666
      %v669 = vshrl.u32 %v634, 16
      %v671 = vshll.u32 %v634, 16
      %v673 = vrot.slane %v671, 1
      %v674 = vor.u32 %v669, %v673
      %v676 = vshrl.u32 %v635, 16
      %v678 = vshll.u32 %v635, 16
      %v680 = vrot.slane %v678, 1
      %v681 = vor.u32 %v676, %v680
      %v683 = vshrl.u32 %v636, 16
      %v685 = vshll.u32 %v636, 16
      %v687 = vrot.slane %v685, 1
      %v688 = vor.u32 %v683, %v687
      %v690 = vshrl.u32 %v637, 16
      %v692 = vshll.u32 %v637, 16
      %v694 = vrot.slane %v692, 1
      %v695 = vor.u32 %v690, %v694
      %v697 = vshrl.u32 %v638, 16
      %v699 = vshll.u32 %v638, 16
      %v701 = vrot.slane %v699, 1
      %v702 = vor.u32 %v697, %v701
      %v704 = vshrl.u32 %v639, 16
      %v706 = vshll.u32 %v639, 16
      %v708 = vrot.slane %v706, 1
      %v709 = vor.u32 %v704, %v708
      %v711 = vshrl.u32 %v640, 16
      %v713 = vshll.u32 %v640, 16
      %v715 = vrot.slane %v713, 1
      %v716 = vor.u32 %v711, %v715
      %v718 = vshrl.u32 %v641, 16
      %v720 = vshll.u32 %v641, 16
      %v722 = vrot.slane %v720, 1
      %v723 = vor.u32 %v718, %v722
      %v725 = vshrl.u32 %v642, 16
      %v727 = vshll.u32 %v642, 16
      %v729 = vrot.slane %v727, 1
      %v730 = vor.u32 %v725, %v729
      %v732 = vshrl.u32 %v643, 16
      %v734 = vshll.u32 %v643, 16
      %v736 = vrot.slane %v734, 1
      %v737 = vor.u32 %v732, %v736
      %v739 = vshrl.u32 %v644, 16
      %v741 = vshll.u32 %v644, 16
      %v743 = vrot.slane %v741, 1
      %v744 = vor.u32 %v739, %v743
      %v746 = vshrl.u32 %v645, 16
      %v748 = vshll.u32 %v645, 16
      %v750 = vrot.slane %v748, 1
      %v751 = vor.u32 %v746, %v750
      %v753 = vshrl.u32 %v646, 16
      %v755 = vshll.u32 %v646, 16
      %v757 = vrot.slane %v755, 1
      %v758 = vor.u32 %v753, %v757
      %759 = vrot.lane.b32.xlu0 %v653, 16
      %v760 = vpop.permute.xlu0 %759
      %761 = vrot.lane.b32.xlu0 %v660, 16
      %v762 = vpop.permute.xlu0 %761
      %763 = vrot.lane.b32.xlu0 %v667, 16
      %v764 = vpop.permute.xlu0 %763
      %765 = vrot.lane.b32.xlu0 %v674, 16
      %v766 = vpop.permute.xlu0 %765
      %767 = vrot.lane.b32.xlu0 %v681, 16
      %v768 = vpop.permute.xlu0 %767
      %769 = vrot.lane.b32.xlu0 %v688, 16
      %v770 = vpop.permute.xlu0 %769
      %771 = vrot.lane.b32.xlu0 %v695, 16
      %v772 = vpop.permute.xlu0 %771
      %773 = vrot.lane.b32.xlu0 %v702, 16
      %v774 = vpop.permute.xlu0 %773
      %775 = vrot.lane.b32.xlu0 %v709, 16
      %v776 = vpop.permute.xlu0 %775
      %777 = vrot.lane.b32.xlu0 %v716, 16
      %v778 = vpop.permute.xlu0 %777
      %779 = vrot.lane.b32.xlu0 %v723, 16
      %v780 = vpop.permute.xlu0 %779
      %781 = vrot.lane.b32.xlu0 %v730, 16
      %v782 = vpop.permute.xlu0 %781
      %783 = vrot.lane.b32.xlu0 %v737, 16
      %v784 = vpop.permute.xlu0 %783
      %785 = vrot.lane.b32.xlu0 %v744, 16
      %v786 = vpop.permute.xlu0 %785
      %787 = vrot.lane.b32.xlu0 %v751, 16
      %v788 = vpop.permute.xlu0 %787
      %789 = vrot.lane.b32.xlu0 %v758, 16
      %v790 = vpop.permute.xlu0 %789
      %v807 = vunpack.c.l.b16 %v471
      %v808 = vunpack.c.l.b16 %v472
      %v809 = vunpack.c.l.b16 %v473
      %v810 = vunpack.c.l.b16 %v474
      %v811 = vunpack.c.l.b16 %v475
      %v812 = vunpack.c.l.b16 %v476
      %v813 = vunpack.c.l.b16 %v477
      %v814 = vunpack.c.l.b16 %v478
      %v815 = vunpack.c.l.b16 %v479
      %v816 = vunpack.c.l.b16 %v480
      %v817 = vunpack.c.l.b16 %v481
      %v818 = vunpack.c.l.b16 %v482
      %v819 = vunpack.c.l.b16 %v483
      %v820 = vunpack.c.l.b16 %v484
      %v821 = vunpack.c.l.b16 %v485
      %v822 = vunpack.c.l.b16 %v486
      %v823 = vpack.c.b16 %v807, %v807
      %v824 = vpack.c.b16 %v808, %v808
      %v825 = vpack.c.b16 %v809, %v809
      %v826 = vpack.c.b16 %v810, %v810
      %v827 = vpack.c.b16 %v811, %v811
      %v828 = vpack.c.b16 %v812, %v812
      %v829 = vpack.c.b16 %v813, %v813
      %v830 = vpack.c.b16 %v814, %v814
      %v831 = vpack.c.b16 %v815, %v815
      %v832 = vpack.c.b16 %v816, %v816
      %v833 = vpack.c.b16 %v817, %v817
      %v834 = vpack.c.b16 %v818, %v818
      %v835 = vpack.c.b16 %v819, %v819
      %v836 = vpack.c.b16 %v820, %v820
      %v837 = vpack.c.b16 %v821, %v821
      %v838 = vpack.c.b16 %v822, %v822
      %839 = vrot.lane.b32.xlu0 %v823, 24
      %v840 = vpop.permute.xlu0 %839
      %841 = vrot.lane.b32.xlu0 %v824, 24
      %v842 = vpop.permute.xlu0 %841
      %843 = vrot.lane.b32.xlu0 %v825, 24
      %v844 = vpop.permute.xlu0 %843
      %845 = vrot.lane.b32.xlu0 %v826, 24
      %v846 = vpop.permute.xlu0 %845
      %847 = vrot.lane.b32.xlu0 %v827, 24
      %v848 = vpop.permute.xlu0 %847
      %849 = vrot.lane.b32.xlu0 %v828, 24
      %v850 = vpop.permute.xlu0 %849
      %851 = vrot.lane.b32.xlu0 %v829, 24
      %v852 = vpop.permute.xlu0 %851
      %853 = vrot.lane.b32.xlu0 %v830, 24
      %v854 = vpop.permute.xlu0 %853
      %855 = vrot.lane.b32.xlu0 %v831, 24
      %v856 = vpop.permute.xlu0 %855
      %857 = vrot.lane.b32.xlu0 %v832, 24
      %v858 = vpop.permute.xlu0 %857
      %859 = vrot.lane.b32.xlu0 %v833, 24
      %v860 = vpop.permute.xlu0 %859
      %861 = vrot.lane.b32.xlu0 %v834, 24
      %v862 = vpop.permute.xlu0 %861
      %863 = vrot.lane.b32.xlu0 %v835, 24
      %v864 = vpop.permute.xlu0 %863
      %865 = vrot.lane.b32.xlu0 %v836, 24
      %v866 = vpop.permute.xlu0 %865
      %867 = vrot.lane.b32.xlu0 %v837, 24
      %v868 = vpop.permute.xlu0 %867
      %869 = vrot.lane.b32.xlu0 %v838, 24
      %v870 = vpop.permute.xlu0 %869
      %v887 = vunpack.c.l.b16 %v495
      %v888 = vunpack.c.l.b16 %v496
      %v889 = vunpack.c.l.b16 %v497
      %v890 = vunpack.c.l.b16 %v498
      %v891 = vunpack.c.l.b16 %v499
      %v892 = vunpack.c.l.b16 %v500
      %v893 = vunpack.c.l.b16 %v501
      %v894 = vunpack.c.l.b16 %v502
      %v895 = vunpack.c.l.b16 %v503
      %v896 = vunpack.c.l.b16 %v504
      %v897 = vunpack.c.l.b16 %v505
      %v898 = vunpack.c.l.b16 %v506
      %v899 = vunpack.c.l.b16 %v507
      %v900 = vunpack.c.l.b16 %v508
      %v901 = vunpack.c.l.b16 %v509
      %v902 = vunpack.c.l.b16 %v510
      %v903 = vpack.c.b16 %v887, %v887
      %v904 = vpack.c.b16 %v888, %v888
      %v905 = vpack.c.b16 %v889, %v889
      %v906 = vpack.c.b16 %v890, %v890
      %v907 = vpack.c.b16 %v891, %v891
      %v908 = vpack.c.b16 %v892, %v892
      %v909 = vpack.c.b16 %v893, %v893
      %v910 = vpack.c.b16 %v894, %v894
      %v911 = vpack.c.b16 %v895, %v895
      %v912 = vpack.c.b16 %v896, %v896
      %v913 = vpack.c.b16 %v897, %v897
      %v914 = vpack.c.b16 %v898, %v898
      %v915 = vpack.c.b16 %v899, %v899
      %v916 = vpack.c.b16 %v900, %v900
      %v917 = vpack.c.b16 %v901, %v901
      %v918 = vpack.c.b16 %v902, %v902
      %919 = vrot.lane.b32.xlu0 %v903, 32
      %v920 = vpop.permute.xlu0 %919
      %921 = vrot.lane.b32.xlu0 %v904, 32
      %v922 = vpop.permute.xlu0 %921
      %923 = vrot.lane.b32.xlu0 %v905, 32
      %v924 = vpop.permute.xlu0 %923
      %925 = vrot.lane.b32.xlu0 %v906, 32
      %v926 = vpop.permute.xlu0 %925
      %927 = vrot.lane.b32.xlu0 %v907, 32
      %v928 = vpop.permute.xlu0 %927
      %929 = vrot.lane.b32.xlu0 %v908, 32
      %v930 = vpop.permute.xlu0 %929
      %931 = vrot.lane.b32.xlu0 %v909, 32
      %v932 = vpop.permute.xlu0 %931
      %933 = vrot.lane.b32.xlu0 %v910, 32
      %v934 = vpop.permute.xlu0 %933
      %935 = vrot.lane.b32.xlu0 %v911, 32
      %v936 = vpop.permute.xlu0 %935
      %937 = vrot.lane.b32.xlu0 %v912, 32
      %v938 = vpop.permute.xlu0 %937
      %939 = vrot.lane.b32.xlu0 %v913, 32
      %v940 = vpop.permute.xlu0 %939
      %941 = vrot.lane.b32.xlu0 %v914, 32
      %v942 = vpop.permute.xlu0 %941
      %943 = vrot.lane.b32.xlu0 %v915, 32
      %v944 = vpop.permute.xlu0 %943
      %945 = vrot.lane.b32.xlu0 %v916, 32
      %v946 = vpop.permute.xlu0 %945
      %947 = vrot.lane.b32.xlu0 %v917, 32
      %v948 = vpop.permute.xlu0 %947
      %949 = vrot.lane.b32.xlu0 %v918, 32
      %v950 = vpop.permute.xlu0 %949
      %v952 = vshrl.u32 %v823, 16
      %v954 = vshll.u32 %v823, 16
      %v956 = vrot.slane %v954, 1
      %v957 = vor.u32 %v952, %v956
      %v959 = vshrl.u32 %v824, 16
      %v961 = vshll.u32 %v824, 16
      %v963 = vrot.slane %v961, 1
      %v964 = vor.u32 %v959, %v963
      %v966 = vshrl.u32 %v825, 16
      %v968 = vshll.u32 %v825, 16
      %v970 = vrot.slane %v968, 1
      %v971 = vor.u32 %v966, %v970
      %v973 = vshrl.u32 %v826, 16
      %v975 = vshll.u32 %v826, 16
      %v977 = vrot.slane %v975, 1
      %v978 = vor.u32 %v973, %v977
      %v980 = vshrl.u32 %v827, 16
      %v982 = vshll.u32 %v827, 16
      %v984 = vrot.slane %v982, 1
      %v985 = vor.u32 %v980, %v984
      %v987 = vshrl.u32 %v828, 16
      %v989 = vshll.u32 %v828, 16
      %v991 = vrot.slane %v989, 1
      %v992 = vor.u32 %v987, %v991
      %v994 = vshrl.u32 %v829, 16
      %v996 = vshll.u32 %v829, 16
      %v998 = vrot.slane %v996, 1
      %v999 = vor.u32 %v994, %v998
      %v1001 = vshrl.u32 %v830, 16
      %v1003 = vshll.u32 %v830, 16
      %v1005 = vrot.slane %v1003, 1
      %v1006 = vor.u32 %v1001, %v1005
      %v1008 = vshrl.u32 %v831, 16
      %v1010 = vshll.u32 %v831, 16
      %v1012 = vrot.slane %v1010, 1
      %v1013 = vor.u32 %v1008, %v1012
      %v1015 = vshrl.u32 %v832, 16
      %v1017 = vshll.u32 %v832, 16
      %v1019 = vrot.slane %v1017, 1
      %v1020 = vor.u32 %v1015, %v1019
      %v1022 = vshrl.u32 %v833, 16
      %v1024 = vshll.u32 %v833, 16
      %v1026 = vrot.slane %v1024, 1
      %v1027 = vor.u32 %v1022, %v1026
      %v1029 = vshrl.u32 %v834, 16
      %v1031 = vshll.u32 %v834, 16
      %v1033 = vrot.slane %v1031, 1
      %v1034 = vor.u32 %v1029, %v1033
      %v1036 = vshrl.u32 %v835, 16
      %v1038 = vshll.u32 %v835, 16
      %v1040 = vrot.slane %v1038, 1
      %v1041 = vor.u32 %v1036, %v1040
      %v1043 = vshrl.u32 %v836, 16
      %v1045 = vshll.u32 %v836, 16
      %v1047 = vrot.slane %v1045, 1
      %v1048 = vor.u32 %v1043, %v1047
      %v1050 = vshrl.u32 %v837, 16
      %v1052 = vshll.u32 %v837, 16
      %v1054 = vrot.slane %v1052, 1
      %v1055 = vor.u32 %v1050, %v1054
      %v1057 = vshrl.u32 %v838, 16
      %v1059 = vshll.u32 %v838, 16
      %v1061 = vrot.slane %v1059, 1
      %v1062 = vor.u32 %v1057, %v1061
      %1063 = vrot.lane.b32.xlu0 %v957, 40
      %v1064 = vpop.permute.xlu0 %1063
      %1065 = vrot.lane.b32.xlu0 %v964, 40
      %v1066 = vpop.permute.xlu0 %1065
      %1067 = vrot.lane.b32.xlu0 %v971, 40
      %v1068 = vpop.permute.xlu0 %1067
      %1069 = vrot.lane.b32.xlu0 %v978, 40
      %v1070 = vpop.permute.xlu0 %1069
      %1071 = vrot.lane.b32.xlu0 %v985, 40
      %v1072 = vpop.permute.xlu0 %1071
      %1073 = vrot.lane.b32.xlu0 %v992, 40
      %v1074 = vpop.permute.xlu0 %1073
      %1075 = vrot.lane.b32.xlu0 %v999, 40
      %v1076 = vpop.permute.xlu0 %1075
      %1077 = vrot.lane.b32.xlu0 %v1006, 40
      %v1078 = vpop.permute.xlu0 %1077
      %1079 = vrot.lane.b32.xlu0 %v1013, 40
      %v1080 = vpop.permute.xlu0 %1079
      %1081 = vrot.lane.b32.xlu0 %v1020, 40
      %v1082 = vpop.permute.xlu0 %1081
      %1083 = vrot.lane.b32.xlu0 %v1027, 40
      %v1084 = vpop.permute.xlu0 %1083
      %1085 = vrot.lane.b32.xlu0 %v1034, 40
      %v1086 = vpop.permute.xlu0 %1085
      %1087 = vrot.lane.b32.xlu0 %v1041, 40
      %v1088 = vpop.permute.xlu0 %1087
      %1089 = vrot.lane.b32.xlu0 %v1048, 40
      %v1090 = vpop.permute.xlu0 %1089
      %1091 = vrot.lane.b32.xlu0 %v1055, 40
      %v1092 = vpop.permute.xlu0 %1091
      %1093 = vrot.lane.b32.xlu0 %v1062, 40
      %v1094 = vpop.permute.xlu0 %1093
      %v1099 = vunpack.c.l.b16 %v415
      %v1100 = vunpack.c.l.b16 %v420
      %v1101 = vunpack.c.l.b16 %v425
      %v1102 = vunpack.c.l.b16 %v430
      %v1103 = vpack.c.b16 %v1099, %v1099
      %v1104 = vpack.c.b16 %v1100, %v1100
      %v1105 = vpack.c.b16 %v1101, %v1101
      %v1106 = vpack.c.b16 %v1102, %v1102
      %1107 = vrot.lane.b32.xlu0 %v632, 48
      %v1108 = vpop.permute.xlu0 %1107
      %1109 = vrot.lane.b32.xlu0 %v633, 48
      %v1110 = vpop.permute.xlu0 %1109
      %1111 = vrot.lane.b32.xlu0 %v634, 48
      %v1112 = vpop.permute.xlu0 %1111
      %1113 = vrot.lane.b32.xlu0 %v1103, 48
      %v1114 = vpop.permute.xlu0 %1113
      %1115 = vrot.lane.b32.xlu0 %v636, 48
      %v1116 = vpop.permute.xlu0 %1115
      %1117 = vrot.lane.b32.xlu0 %v637, 48
      %v1118 = vpop.permute.xlu0 %1117
      %1119 = vrot.lane.b32.xlu0 %v638, 48
      %v1120 = vpop.permute.xlu0 %1119
      %1121 = vrot.lane.b32.xlu0 %v1104, 48
      %v1122 = vpop.permute.xlu0 %1121
      %1123 = vrot.lane.b32.xlu0 %v640, 48
      %v1124 = vpop.permute.xlu0 %1123
      %1125 = vrot.lane.b32.xlu0 %v641, 48
      %v1126 = vpop.permute.xlu0 %1125
      %1127 = vrot.lane.b32.xlu0 %v642, 48
      %v1128 = vpop.permute.xlu0 %1127
      %1129 = vrot.lane.b32.xlu0 %v1105, 48
      %v1130 = vpop.permute.xlu0 %1129
      %1131 = vrot.lane.b32.xlu0 %v644, 48
      %v1132 = vpop.permute.xlu0 %1131
      %1133 = vrot.lane.b32.xlu0 %v645, 48
      %v1134 = vpop.permute.xlu0 %1133
      %1135 = vrot.lane.b32.xlu0 %v646, 48
      %v1136 = vpop.permute.xlu0 %1135
      %1137 = vrot.lane.b32.xlu0 %v1106, 48
      %v1138 = vpop.permute.xlu0 %1137
      %v1143 = vunpack.c.l.b16 %v445
      %v1144 = vunpack.c.l.b16 %v450
      %v1145 = vunpack.c.l.b16 %v455
      %v1146 = vunpack.c.l.b16 %v460
      %v1147 = vpack.c.b16 %v1143, %v1143
      %v1148 = vpack.c.b16 %v1144, %v1144
      %v1149 = vpack.c.b16 %v1145, %v1145
      %v1150 = vpack.c.b16 %v1146, %v1146
      %1151 = vrot.lane.b32.xlu0 %v552, 56
      %v1152 = vpop.permute.xlu0 %1151
      %1153 = vrot.lane.b32.xlu0 %v553, 56
      %v1154 = vpop.permute.xlu0 %1153
      %1155 = vrot.lane.b32.xlu0 %v554, 56
      %v1156 = vpop.permute.xlu0 %1155
      %1157 = vrot.lane.b32.xlu0 %v1147, 56
      %v1158 = vpop.permute.xlu0 %1157
      %1159 = vrot.lane.b32.xlu0 %v556, 56
      %v1160 = vpop.permute.xlu0 %1159
      %1161 = vrot.lane.b32.xlu0 %v557, 56
      %v1162 = vpop.permute.xlu0 %1161
      %1163 = vrot.lane.b32.xlu0 %v558, 56
      %v1164 = vpop.permute.xlu0 %1163
      %1165 = vrot.lane.b32.xlu0 %v1148, 56
      %v1166 = vpop.permute.xlu0 %1165
      %1167 = vrot.lane.b32.xlu0 %v560, 56
      %v1168 = vpop.permute.xlu0 %1167
      %1169 = vrot.lane.b32.xlu0 %v561, 56
      %v1170 = vpop.permute.xlu0 %1169
      %1171 = vrot.lane.b32.xlu0 %v562, 56
      %v1172 = vpop.permute.xlu0 %1171
      %1173 = vrot.lane.b32.xlu0 %v1149, 56
      %v1174 = vpop.permute.xlu0 %1173
      %1175 = vrot.lane.b32.xlu0 %v564, 56
      %v1176 = vpop.permute.xlu0 %1175
      %1177 = vrot.lane.b32.xlu0 %v565, 56
      %v1178 = vpop.permute.xlu0 %1177
      %1179 = vrot.lane.b32.xlu0 %v566, 56
      %v1180 = vpop.permute.xlu0 %1179
      %1181 = vrot.lane.b32.xlu0 %v1150, 56
      %v1182 = vpop.permute.xlu0 %1181
      %v1184 = vshrl.u32 %v1103, 16
      %v1186 = vshll.u32 %v1103, 16
      %v1188 = vrot.slane %v1186, 1
      %v1189 = vor.u32 %v1184, %v1188
      %v1191 = vshrl.u32 %v1104, 16
      %v1193 = vshll.u32 %v1104, 16
      %v1195 = vrot.slane %v1193, 1
      %v1196 = vor.u32 %v1191, %v1195
      %v1198 = vshrl.u32 %v1105, 16
      %v1200 = vshll.u32 %v1105, 16
      %v1202 = vrot.slane %v1200, 1
      %v1203 = vor.u32 %v1198, %v1202
      %v1205 = vshrl.u32 %v1106, 16
      %v1207 = vshll.u32 %v1106, 16
      %v1209 = vrot.slane %v1207, 1
      %v1210 = vor.u32 %v1205, %v1209
      %1211 = vrot.lane.b32.xlu0 %v660, 64
      %v1212 = vpop.permute.xlu0 %1211
      %1213 = vrot.lane.b32.xlu0 %v667, 64
      %v1214 = vpop.permute.xlu0 %1213
      %1215 = vrot.lane.b32.xlu0 %v674, 64
      %v1216 = vpop.permute.xlu0 %1215
      %1217 = vrot.lane.b32.xlu0 %v1189, 64
      %v1218 = vpop.permute.xlu0 %1217
      %1219 = vrot.lane.b32.xlu0 %v688, 64
      %v1220 = vpop.permute.xlu0 %1219
      %1221 = vrot.lane.b32.xlu0 %v695, 64
      %v1222 = vpop.permute.xlu0 %1221
      %1223 = vrot.lane.b32.xlu0 %v702, 64
      %v1224 = vpop.permute.xlu0 %1223
      %1225 = vrot.lane.b32.xlu0 %v1196, 64
      %v1226 = vpop.permute.xlu0 %1225
      %1227 = vrot.lane.b32.xlu0 %v716, 64
      %v1228 = vpop.permute.xlu0 %1227
      %1229 = vrot.lane.b32.xlu0 %v723, 64
      %v1230 = vpop.permute.xlu0 %1229
      %1231 = vrot.lane.b32.xlu0 %v730, 64
      %v1232 = vpop.permute.xlu0 %1231
      %1233 = vrot.lane.b32.xlu0 %v1203, 64
      %v1234 = vpop.permute.xlu0 %1233
      %1235 = vrot.lane.b32.xlu0 %v744, 64
      %v1236 = vpop.permute.xlu0 %1235
      %1237 = vrot.lane.b32.xlu0 %v751, 64
      %v1238 = vpop.permute.xlu0 %1237
      %1239 = vrot.lane.b32.xlu0 %v758, 64
      %v1240 = vpop.permute.xlu0 %1239
      %1241 = vrot.lane.b32.xlu0 %v1210, 64
      %v1242 = vpop.permute.xlu0 %1241
      %v1247 = vunpack.c.l.b16 %v431
      %v1248 = vunpack.c.l.b16 %v432
      %v1249 = vunpack.c.l.b16 %v433
      %v1250 = vunpack.c.l.b16 %v434
      %v1251 = vpack.c.b16 %v1247, %v1247
      %v1252 = vpack.c.b16 %v1248, %v1248
      %v1253 = vpack.c.b16 %v1249, %v1249
      %v1254 = vpack.c.b16 %v1250, %v1250
      %1255 = vrot.lane.b32.xlu0 %v635, 72
      %v1256 = vpop.permute.xlu0 %1255
      %1257 = vrot.lane.b32.xlu0 %v636, 72
      %v1258 = vpop.permute.xlu0 %1257
      %1259 = vrot.lane.b32.xlu0 %v637, 72
      %v1260 = vpop.permute.xlu0 %1259
      %1261 = vrot.lane.b32.xlu0 %v638, 72
      %v1262 = vpop.permute.xlu0 %1261
      %1263 = vrot.lane.b32.xlu0 %v639, 72
      %v1264 = vpop.permute.xlu0 %1263
      %1265 = vrot.lane.b32.xlu0 %v640, 72
      %v1266 = vpop.permute.xlu0 %1265
      %1267 = vrot.lane.b32.xlu0 %v641, 72
      %v1268 = vpop.permute.xlu0 %1267
      %1269 = vrot.lane.b32.xlu0 %v642, 72
      %v1270 = vpop.permute.xlu0 %1269
      %1271 = vrot.lane.b32.xlu0 %v643, 72
      %v1272 = vpop.permute.xlu0 %1271
      %1273 = vrot.lane.b32.xlu0 %v644, 72
      %v1274 = vpop.permute.xlu0 %1273
      %1275 = vrot.lane.b32.xlu0 %v645, 72
      %v1276 = vpop.permute.xlu0 %1275
      %1277 = vrot.lane.b32.xlu0 %v646, 72
      %v1278 = vpop.permute.xlu0 %1277
      %1279 = vrot.lane.b32.xlu0 %v1251, 72
      %v1280 = vpop.permute.xlu0 %1279
      %1281 = vrot.lane.b32.xlu0 %v1252, 72
      %v1282 = vpop.permute.xlu0 %1281
      %1283 = vrot.lane.b32.xlu0 %v1253, 72
      %v1284 = vpop.permute.xlu0 %1283
      %1285 = vrot.lane.b32.xlu0 %v1254, 72
      %v1286 = vpop.permute.xlu0 %1285
      %v1291 = vunpack.c.l.b16 %v461
      %v1292 = vunpack.c.l.b16 %v462
      %v1293 = vunpack.c.l.b16 %v463
      %v1294 = vunpack.c.l.b16 %v464
      %v1295 = vpack.c.b16 %v1291, %v1291
      %v1296 = vpack.c.b16 %v1292, %v1292
      %v1297 = vpack.c.b16 %v1293, %v1293
      %v1298 = vpack.c.b16 %v1294, %v1294
      %1299 = vrot.lane.b32.xlu0 %v555, 80
      %v1300 = vpop.permute.xlu0 %1299
      %1301 = vrot.lane.b32.xlu0 %v556, 80
      %v1302 = vpop.permute.xlu0 %1301
      %1303 = vrot.lane.b32.xlu0 %v557, 80
      %v1304 = vpop.permute.xlu0 %1303
      %1305 = vrot.lane.b32.xlu0 %v558, 80
      %v1306 = vpop.permute.xlu0 %1305
      %1307 = vrot.lane.b32.xlu0 %v559, 80
      %v1308 = vpop.permute.xlu0 %1307
      %1309 = vrot.lane.b32.xlu0 %v560, 80
      %v1310 = vpop.permute.xlu0 %1309
      %1311 = vrot.lane.b32.xlu0 %v561, 80
      %v1312 = vpop.permute.xlu0 %1311
      %1313 = vrot.lane.b32.xlu0 %v562, 80
      %v1314 = vpop.permute.xlu0 %1313
      %1315 = vrot.lane.b32.xlu0 %v563, 80
      %v1316 = vpop.permute.xlu0 %1315
      %1317 = vrot.lane.b32.xlu0 %v564, 80
      %v1318 = vpop.permute.xlu0 %1317
      %1319 = vrot.lane.b32.xlu0 %v565, 80
      %v1320 = vpop.permute.xlu0 %1319
      %1321 = vrot.lane.b32.xlu0 %v566, 80
      %v1322 = vpop.permute.xlu0 %1321
      %1323 = vrot.lane.b32.xlu0 %v1295, 80
      %v1324 = vpop.permute.xlu0 %1323
      %1325 = vrot.lane.b32.xlu0 %v1296, 80
      %v1326 = vpop.permute.xlu0 %1325
      %1327 = vrot.lane.b32.xlu0 %v1297, 80
      %v1328 = vpop.permute.xlu0 %1327
      %1329 = vrot.lane.b32.xlu0 %v1298, 80
      %v1330 = vpop.permute.xlu0 %1329
      %v1332 = vshrl.u32 %v1251, 16
      %v1334 = vshll.u32 %v1251, 16
      %v1336 = vrot.slane %v1334, 1
      %v1337 = vor.u32 %v1332, %v1336
      %v1339 = vshrl.u32 %v1252, 16
      %v1341 = vshll.u32 %v1252, 16
      %v1343 = vrot.slane %v1341, 1
      %v1344 = vor.u32 %v1339, %v1343
      %v1346 = vshrl.u32 %v1253, 16
      %v1348 = vshll.u32 %v1253, 16
      %v1350 = vrot.slane %v1348, 1
      %v1351 = vor.u32 %v1346, %v1350
      %v1353 = vshrl.u32 %v1254, 16
      %v1355 = vshll.u32 %v1254, 16
      %v1357 = vrot.slane %v1355, 1
      %v1358 = vor.u32 %v1353, %v1357
      %1359 = vrot.lane.b32.xlu0 %v681, 88
      %v1360 = vpop.permute.xlu0 %1359
      %1361 = vrot.lane.b32.xlu0 %v688, 88
      %v1362 = vpop.permute.xlu0 %1361
      %1363 = vrot.lane.b32.xlu0 %v695, 88
      %v1364 = vpop.permute.xlu0 %1363
      %1365 = vrot.lane.b32.xlu0 %v702, 88
      %v1366 = vpop.permute.xlu0 %1365
      %1367 = vrot.lane.b32.xlu0 %v709, 88
      %v1368 = vpop.permute.xlu0 %1367
      %1369 = vrot.lane.b32.xlu0 %v716, 88
      %v1370 = vpop.permute.xlu0 %1369
      %1371 = vrot.lane.b32.xlu0 %v723, 88
      %v1372 = vpop.permute.xlu0 %1371
      %1373 = vrot.lane.b32.xlu0 %v730, 88
      %v1374 = vpop.permute.xlu0 %1373
      %1375 = vrot.lane.b32.xlu0 %v737, 88
      %v1376 = vpop.permute.xlu0 %1375
      %1377 = vrot.lane.b32.xlu0 %v744, 88
      %v1378 = vpop.permute.xlu0 %1377
      %1379 = vrot.lane.b32.xlu0 %v751, 88
      %v1380 = vpop.permute.xlu0 %1379
      %1381 = vrot.lane.b32.xlu0 %v758, 88
      %v1382 = vpop.permute.xlu0 %1381
      %1383 = vrot.lane.b32.xlu0 %v1337, 88
      %v1384 = vpop.permute.xlu0 %1383
      %1385 = vrot.lane.b32.xlu0 %v1344, 88
      %v1386 = vpop.permute.xlu0 %1385
      %1387 = vrot.lane.b32.xlu0 %v1351, 88
      %v1388 = vpop.permute.xlu0 %1387
      %1389 = vrot.lane.b32.xlu0 %v1358, 88
      %v1390 = vpop.permute.xlu0 %1389
      %v1395 = vunpack.c.l.b16 %v487
      %v1396 = vunpack.c.l.b16 %v488
      %v1397 = vunpack.c.l.b16 %v489
      %v1398 = vunpack.c.l.b16 %v490
      %v1399 = vpack.c.b16 %v1395, %v1395
      %v1400 = vpack.c.b16 %v1396, %v1396
      %v1401 = vpack.c.b16 %v1397, %v1397
      %v1402 = vpack.c.b16 %v1398, %v1398
      %1403 = vrot.lane.b32.xlu0 %v827, 96
      %v1404 = vpop.permute.xlu0 %1403
      %1405 = vrot.lane.b32.xlu0 %v828, 96
      %v1406 = vpop.permute.xlu0 %1405
      %1407 = vrot.lane.b32.xlu0 %v829, 96
      %v1408 = vpop.permute.xlu0 %1407
      %1409 = vrot.lane.b32.xlu0 %v830, 96
      %v1410 = vpop.permute.xlu0 %1409
      %1411 = vrot.lane.b32.xlu0 %v831, 96
      %v1412 = vpop.permute.xlu0 %1411
      %1413 = vrot.lane.b32.xlu0 %v832, 96
      %v1414 = vpop.permute.xlu0 %1413
      %1415 = vrot.lane.b32.xlu0 %v833, 96
      %v1416 = vpop.permute.xlu0 %1415
      %1417 = vrot.lane.b32.xlu0 %v834, 96
      %v1418 = vpop.permute.xlu0 %1417
      %1419 = vrot.lane.b32.xlu0 %v835, 96
      %v1420 = vpop.permute.xlu0 %1419
      %1421 = vrot.lane.b32.xlu0 %v836, 96
      %v1422 = vpop.permute.xlu0 %1421
      %1423 = vrot.lane.b32.xlu0 %v837, 96
      %v1424 = vpop.permute.xlu0 %1423
      %1425 = vrot.lane.b32.xlu0 %v838, 96
      %v1426 = vpop.permute.xlu0 %1425
      %1427 = vrot.lane.b32.xlu0 %v1399, 96
      %v1428 = vpop.permute.xlu0 %1427
      %1429 = vrot.lane.b32.xlu0 %v1400, 96
      %v1430 = vpop.permute.xlu0 %1429
      %1431 = vrot.lane.b32.xlu0 %v1401, 96
      %v1432 = vpop.permute.xlu0 %1431
      %1433 = vrot.lane.b32.xlu0 %v1402, 96
      %v1434 = vpop.permute.xlu0 %1433
      %v1439 = vunpack.c.l.b16 %v511
      %v1440 = vunpack.c.l.b16 %v512
      %v1441 = vunpack.c.l.b16 %v513
      %v1442 = vunpack.c.l.b16 %v514
      %v1443 = vpack.c.b16 %v1439, %v1439
      %v1444 = vpack.c.b16 %v1440, %v1440
      %v1445 = vpack.c.b16 %v1441, %v1441
      %v1446 = vpack.c.b16 %v1442, %v1442
      %1447 = vrot.lane.b32.xlu0 %v907, 104
      %v1448 = vpop.permute.xlu0 %1447
      %1449 = vrot.lane.b32.xlu0 %v908, 104
      %v1450 = vpop.permute.xlu0 %1449
      %1451 = vrot.lane.b32.xlu0 %v909, 104
      %v1452 = vpop.permute.xlu0 %1451
      %1453 = vrot.lane.b32.xlu0 %v910, 104
      %v1454 = vpop.permute.xlu0 %1453
      %1455 = vrot.lane.b32.xlu0 %v911, 104
      %v1456 = vpop.permute.xlu0 %1455
      %1457 = vrot.lane.b32.xlu0 %v912, 104
      %v1458 = vpop.permute.xlu0 %1457
      %1459 = vrot.lane.b32.xlu0 %v913, 104
      %v1460 = vpop.permute.xlu0 %1459
      %1461 = vrot.lane.b32.xlu0 %v914, 104
      %v1462 = vpop.permute.xlu0 %1461
      %1463 = vrot.lane.b32.xlu0 %v915, 104
      %v1464 = vpop.permute.xlu0 %1463
      %1465 = vrot.lane.b32.xlu0 %v916, 104
      %v1466 = vpop.permute.xlu0 %1465
      %1467 = vrot.lane.b32.xlu0 %v917, 104
      %v1468 = vpop.permute.xlu0 %1467
      %1469 = vrot.lane.b32.xlu0 %v918, 104
      %v1470 = vpop.permute.xlu0 %1469
      %1471 = vrot.lane.b32.xlu0 %v1443, 104
      %v1472 = vpop.permute.xlu0 %1471
      %1473 = vrot.lane.b32.xlu0 %v1444, 104
      %v1474 = vpop.permute.xlu0 %1473
      %1475 = vrot.lane.b32.xlu0 %v1445, 104
      %v1476 = vpop.permute.xlu0 %1475
      %1477 = vrot.lane.b32.xlu0 %v1446, 104
      %v1478 = vpop.permute.xlu0 %1477
      %v1480 = vshrl.u32 %v1399, 16
      %v1482 = vshll.u32 %v1399, 16
      %v1484 = vrot.slane %v1482, 1
      %v1485 = vor.u32 %v1480, %v1484
      %v1487 = vshrl.u32 %v1400, 16
      %v1489 = vshll.u32 %v1400, 16
      %v1491 = vrot.slane %v1489, 1
      %v1492 = vor.u32 %v1487, %v1491
      %v1494 = vshrl.u32 %v1401, 16
      %v1496 = vshll.u32 %v1401, 16
      %v1498 = vrot.slane %v1496, 1
      %v1499 = vor.u32 %v1494, %v1498
      %v1501 = vshrl.u32 %v1402, 16
      %v1503 = vshll.u32 %v1402, 16
      %v1505 = vrot.slane %v1503, 1
      %v1506 = vor.u32 %v1501, %v1505
      %1507 = vrot.lane.b32.xlu0 %v985, 112
      %v1508 = vpop.permute.xlu0 %1507
      %1509 = vrot.lane.b32.xlu0 %v992, 112
      %v1510 = vpop.permute.xlu0 %1509
      %1511 = vrot.lane.b32.xlu0 %v999, 112
      %v1512 = vpop.permute.xlu0 %1511
      %1513 = vrot.lane.b32.xlu0 %v1006, 112
      %v1514 = vpop.permute.xlu0 %1513
      %1515 = vrot.lane.b32.xlu0 %v1013, 112
      %v1516 = vpop.permute.xlu0 %1515
      %1517 = vrot.lane.b32.xlu0 %v1020, 112
      %v1518 = vpop.permute.xlu0 %1517
      %1519 = vrot.lane.b32.xlu0 %v1027, 112
      %v1520 = vpop.permute.xlu0 %1519
      %1521 = vrot.lane.b32.xlu0 %v1034, 112
      %v1522 = vpop.permute.xlu0 %1521
      %1523 = vrot.lane.b32.xlu0 %v1041, 112
      %v1524 = vpop.permute.xlu0 %1523
      %1525 = vrot.lane.b32.xlu0 %v1048, 112
      %v1526 = vpop.permute.xlu0 %1525
      %1527 = vrot.lane.b32.xlu0 %v1055, 112
      %v1528 = vpop.permute.xlu0 %1527
      %1529 = vrot.lane.b32.xlu0 %v1062, 112
      %v1530 = vpop.permute.xlu0 %1529
      %1531 = vrot.lane.b32.xlu0 %v1485, 112
      %v1532 = vpop.permute.xlu0 %1531
      %1533 = vrot.lane.b32.xlu0 %v1492, 112
      %v1534 = vpop.permute.xlu0 %1533
      %1535 = vrot.lane.b32.xlu0 %v1499, 112
      %v1536 = vpop.permute.xlu0 %1535
      %1537 = vrot.lane.b32.xlu0 %v1506, 112
      %v1538 = vpop.permute.xlu0 %1537
      %v1540 = vunpack.c.l.b16 %v435
      %v1541 = vpack.c.b16 %v1540, %v1540
      %1542 = vrot.lane.b32.xlu0 %v636, 120
      %v1543 = vpop.permute.xlu0 %1542
      %1544 = vrot.lane.b32.xlu0 %v637, 120
      %v1545 = vpop.permute.xlu0 %1544
      %1546 = vrot.lane.b32.xlu0 %v638, 120
      %v1547 = vpop.permute.xlu0 %1546
      %1548 = vrot.lane.b32.xlu0 %v1104, 120
      %v1549 = vpop.permute.xlu0 %1548
      %1550 = vrot.lane.b32.xlu0 %v640, 120
      %v1551 = vpop.permute.xlu0 %1550
      %1552 = vrot.lane.b32.xlu0 %v641, 120
      %v1553 = vpop.permute.xlu0 %1552
      %1554 = vrot.lane.b32.xlu0 %v642, 120
      %v1555 = vpop.permute.xlu0 %1554
      %1556 = vrot.lane.b32.xlu0 %v1105, 120
      %v1557 = vpop.permute.xlu0 %1556
      %1558 = vrot.lane.b32.xlu0 %v644, 120
      %v1559 = vpop.permute.xlu0 %1558
      %1560 = vrot.lane.b32.xlu0 %v645, 120
      %v1561 = vpop.permute.xlu0 %1560
      %1562 = vrot.lane.b32.xlu0 %v646, 120
      %v1563 = vpop.permute.xlu0 %1562
      %1564 = vrot.lane.b32.xlu0 %v1106, 120
      %v1565 = vpop.permute.xlu0 %1564
      %1566 = vrot.lane.b32.xlu0 %v1252, 120
      %v1567 = vpop.permute.xlu0 %1566
      %1568 = vrot.lane.b32.xlu0 %v1253, 120
      %v1569 = vpop.permute.xlu0 %1568
      %1570 = vrot.lane.b32.xlu0 %v1254, 120
      %v1571 = vpop.permute.xlu0 %1570
      %1572 = vrot.lane.b32.xlu0 %v1541, 120
      %v1573 = vpop.permute.xlu0 %1572
      %vm1574 = vcmask 64512
      %v1577 = vsel %vm1574, %v411, %v568
      %v1580 = vsel %vm1574, %v412, %v570
      %v1583 = vsel %vm1574, %v413, %v572
      %v1586 = vsel %vm1574, %v414, %v574
      %v1589 = vsel %vm1574, %v416, %v576
      %v1592 = vsel %vm1574, %v417, %v578
      %v1595 = vsel %vm1574, %v418, %v580
      %v1598 = vsel %vm1574, %v419, %v582
      %v1601 = vsel %vm1574, %v421, %v584
      %v1604 = vsel %vm1574, %v422, %v586
      %v1607 = vsel %vm1574, %v423, %v588
      %v1610 = vsel %vm1574, %v424, %v590
      %v1613 = vsel %vm1574, %v426, %v592
      %v1616 = vsel %vm1574, %v427, %v594
      %v1619 = vsel %vm1574, %v428, %v596
      %v1622 = vsel %vm1574, %v429, %v598
      %vm1623 = vcmask 130048
      %v1625 = vsel %vm1623, %v1577, %v760
      %v1627 = vsel %vm1623, %v1580, %v762
      %v1629 = vsel %vm1623, %v1583, %v764
      %v1631 = vsel %vm1623, %v1586, %v766
      %v1633 = vsel %vm1623, %v1589, %v768
      %v1635 = vsel %vm1623, %v1592, %v770
      %v1637 = vsel %vm1623, %v1595, %v772
      %v1639 = vsel %vm1623, %v1598, %v774
      %v1641 = vsel %vm1623, %v1601, %v776
      %v1643 = vsel %vm1623, %v1604, %v778
      %v1645 = vsel %vm1623, %v1607, %v780
      %v1647 = vsel %vm1623, %v1610, %v782
      %v1649 = vsel %vm1623, %v1613, %v784
      %v1651 = vsel %vm1623, %v1616, %v786
      %v1653 = vsel %vm1623, %v1619, %v788
      %v1655 = vsel %vm1623, %v1622, %v790
      %vm1656 = vcmask 195584
      %v1658 = vsel %vm1656, %v1625, %v840
      %v1660 = vsel %vm1656, %v1627, %v842
      %v1662 = vsel %vm1656, %v1629, %v844
      %v1664 = vsel %vm1656, %v1631, %v846
      %v1666 = vsel %vm1656, %v1633, %v848
      %v1668 = vsel %vm1656, %v1635, %v850
      %v1670 = vsel %vm1656, %v1637, %v852
      %v1672 = vsel %vm1656, %v1639, %v854
      %v1674 = vsel %vm1656, %v1641, %v856
      %v1676 = vsel %vm1656, %v1643, %v858
      %v1678 = vsel %vm1656, %v1645, %v860
      %v1680 = vsel %vm1656, %v1647, %v862
      %v1682 = vsel %vm1656, %v1649, %v864
      %v1684 = vsel %vm1656, %v1651, %v866
      %v1686 = vsel %vm1656, %v1653, %v868
      %v1688 = vsel %vm1656, %v1655, %v870
      %vm1689 = vcmask 261120
      %v1691 = vsel %vm1689, %v1658, %v920
      %v1693 = vsel %vm1689, %v1660, %v922
      %v1695 = vsel %vm1689, %v1662, %v924
      %v1697 = vsel %vm1689, %v1664, %v926
      %v1699 = vsel %vm1689, %v1666, %v928
      %v1701 = vsel %vm1689, %v1668, %v930
      %v1703 = vsel %vm1689, %v1670, %v932
      %v1705 = vsel %vm1689, %v1672, %v934
      %v1707 = vsel %vm1689, %v1674, %v936
      %v1709 = vsel %vm1689, %v1676, %v938
      %v1711 = vsel %vm1689, %v1678, %v940
      %v1713 = vsel %vm1689, %v1680, %v942
      %v1715 = vsel %vm1689, %v1682, %v944
      %v1717 = vsel %vm1689, %v1684, %v946
      %v1719 = vsel %vm1689, %v1686, %v948
      %v1721 = vsel %vm1689, %v1688, %v950
      %vm1722 = vcmask 326656
      %v1724 = vsel %vm1722, %v1691, %v1064
      %v1726 = vsel %vm1722, %v1693, %v1066
      %v1728 = vsel %vm1722, %v1695, %v1068
      %v1730 = vsel %vm1722, %v1697, %v1070
      %v1732 = vsel %vm1722, %v1699, %v1072
      %v1734 = vsel %vm1722, %v1701, %v1074
      %v1736 = vsel %vm1722, %v1703, %v1076
      %v1738 = vsel %vm1722, %v1705, %v1078
      %v1740 = vsel %vm1722, %v1707, %v1080
      %v1742 = vsel %vm1722, %v1709, %v1082
      %v1744 = vsel %vm1722, %v1711, %v1084
      %v1746 = vsel %vm1722, %v1713, %v1086
      %v1748 = vsel %vm1722, %v1715, %v1088
      %v1750 = vsel %vm1722, %v1717, %v1090
      %v1752 = vsel %vm1722, %v1719, %v1092
      %v1754 = vsel %vm1722, %v1721, %v1094
      %vm1755 = vcmask 392192
      %v1757 = vsel %vm1755, %v1724, %v1108
      %v1759 = vsel %vm1755, %v1726, %v1110
      %v1761 = vsel %vm1755, %v1728, %v1112
      %v1763 = vsel %vm1755, %v1730, %v1114
      %v1765 = vsel %vm1755, %v1732, %v1116
      %v1767 = vsel %vm1755, %v1734, %v1118
      %v1769 = vsel %vm1755, %v1736, %v1120
      %v1771 = vsel %vm1755, %v1738, %v1122
      %v1773 = vsel %vm1755, %v1740, %v1124
      %v1775 = vsel %vm1755, %v1742, %v1126
      %v1777 = vsel %vm1755, %v1744, %v1128
      %v1779 = vsel %vm1755, %v1746, %v1130
      %v1781 = vsel %vm1755, %v1748, %v1132
      %v1783 = vsel %vm1755, %v1750, %v1134
      %v1785 = vsel %vm1755, %v1752, %v1136
      %v1787 = vsel %vm1755, %v1754, %v1138
      %vm1788 = vcmask 457728
      %v1790 = vsel %vm1788, %v1757, %v1152
      %v1792 = vsel %vm1788, %v1759, %v1154
      %v1794 = vsel %vm1788, %v1761, %v1156
      %v1796 = vsel %vm1788, %v1763, %v1158
      %v1798 = vsel %vm1788, %v1765, %v1160
      %v1800 = vsel %vm1788, %v1767, %v1162
      %v1802 = vsel %vm1788, %v1769, %v1164
      %v1804 = vsel %vm1788, %v1771, %v1166
      %v1806 = vsel %vm1788, %v1773, %v1168
      %v1808 = vsel %vm1788, %v1775, %v1170
      %v1810 = vsel %vm1788, %v1777, %v1172
      %v1812 = vsel %vm1788, %v1779, %v1174
      %v1814 = vsel %vm1788, %v1781, %v1176
      %v1816 = vsel %vm1788, %v1783, %v1178
      %v1818 = vsel %vm1788, %v1785, %v1180
      %v1820 = vsel %vm1788, %v1787, %v1182
      %vm1821 = vcmask 523264
      %v1823 = vsel %vm1821, %v1790, %v1212
      %v1825 = vsel %vm1821, %v1792, %v1214
      %v1827 = vsel %vm1821, %v1794, %v1216
      %v1829 = vsel %vm1821, %v1796, %v1218
      %v1831 = vsel %vm1821, %v1798, %v1220
      %v1833 = vsel %vm1821, %v1800, %v1222
      %v1835 = vsel %vm1821, %v1802, %v1224
      %v1837 = vsel %vm1821, %v1804, %v1226
      %v1839 = vsel %vm1821, %v1806, %v1228
      %v1841 = vsel %vm1821, %v1808, %v1230
      %v1843 = vsel %vm1821, %v1810, %v1232
      %v1845 = vsel %vm1821, %v1812, %v1234
      %v1847 = vsel %vm1821, %v1814, %v1236
      %v1849 = vsel %vm1821, %v1816, %v1238
      %v1851 = vsel %vm1821, %v1818, %v1240
      %v1853 = vsel %vm1821, %v1820, %v1242
      %vm1854 = vcmask 588800
      %v1856 = vsel %vm1854, %v1823, %v1256
      %v1858 = vsel %vm1854, %v1825, %v1258
      %v1860 = vsel %vm1854, %v1827, %v1260
      %v1862 = vsel %vm1854, %v1829, %v1262
      %v1864 = vsel %vm1854, %v1831, %v1264
      %v1866 = vsel %vm1854, %v1833, %v1266
      %v1868 = vsel %vm1854, %v1835, %v1268
      %v1870 = vsel %vm1854, %v1837, %v1270
      %v1872 = vsel %vm1854, %v1839, %v1272
      %v1874 = vsel %vm1854, %v1841, %v1274
      %v1876 = vsel %vm1854, %v1843, %v1276
      %v1878 = vsel %vm1854, %v1845, %v1278
      %v1880 = vsel %vm1854, %v1847, %v1280
      %v1882 = vsel %vm1854, %v1849, %v1282
      %v1884 = vsel %vm1854, %v1851, %v1284
      %v1886 = vsel %vm1854, %v1853, %v1286
      %vm1887 = vcmask 654336
      %v1889 = vsel %vm1887, %v1856, %v1300
      %v1891 = vsel %vm1887, %v1858, %v1302
      %v1893 = vsel %vm1887, %v1860, %v1304
      %v1895 = vsel %vm1887, %v1862, %v1306
      %v1897 = vsel %vm1887, %v1864, %v1308
      %v1899 = vsel %vm1887, %v1866, %v1310
      %v1901 = vsel %vm1887, %v1868, %v1312
      %v1903 = vsel %vm1887, %v1870, %v1314
      %v1905 = vsel %vm1887, %v1872, %v1316
      %v1907 = vsel %vm1887, %v1874, %v1318
      %v1909 = vsel %vm1887, %v1876, %v1320
      %v1911 = vsel %vm1887, %v1878, %v1322
      %v1913 = vsel %vm1887, %v1880, %v1324
      %v1915 = vsel %vm1887, %v1882, %v1326
      %v1917 = vsel %vm1887, %v1884, %v1328
      %v1919 = vsel %vm1887, %v1886, %v1330
      %vm1920 = vcmask 719872
      %v1922 = vsel %vm1920, %v1889, %v1360
      %v1924 = vsel %vm1920, %v1891, %v1362
      %v1926 = vsel %vm1920, %v1893, %v1364
      %v1928 = vsel %vm1920, %v1895, %v1366
      %v1930 = vsel %vm1920, %v1897, %v1368
      %v1932 = vsel %vm1920, %v1899, %v1370
      %v1934 = vsel %vm1920, %v1901, %v1372
      %v1936 = vsel %vm1920, %v1903, %v1374
      %v1938 = vsel %vm1920, %v1905, %v1376
      %v1940 = vsel %vm1920, %v1907, %v1378
      %v1942 = vsel %vm1920, %v1909, %v1380
      %v1944 = vsel %vm1920, %v1911, %v1382
      %v1946 = vsel %vm1920, %v1913, %v1384
      %v1948 = vsel %vm1920, %v1915, %v1386
      %v1950 = vsel %vm1920, %v1917, %v1388
      %v1952 = vsel %vm1920, %v1919, %v1390
      %vm1953 = vcmask 785408
      %v1955 = vsel %vm1953, %v1922, %v1404
      %v1957 = vsel %vm1953, %v1924, %v1406
      %v1959 = vsel %vm1953, %v1926, %v1408
      %v1961 = vsel %vm1953, %v1928, %v1410
      %v1963 = vsel %vm1953, %v1930, %v1412
      %v1965 = vsel %vm1953, %v1932, %v1414
      %v1967 = vsel %vm1953, %v1934, %v1416
      %v1969 = vsel %vm1953, %v1936, %v1418
      %v1971 = vsel %vm1953, %v1938, %v1420
      %v1973 = vsel %vm1953, %v1940, %v1422
      %v1975 = vsel %vm1953, %v1942, %v1424
      %v1977 = vsel %vm1953, %v1944, %v1426
      %v1979 = vsel %vm1953, %v1946, %v1428
      %v1981 = vsel %vm1953, %v1948, %v1430
      %v1983 = vsel %vm1953, %v1950, %v1432
      %v1985 = vsel %vm1953, %v1952, %v1434
      %vm1986 = vcmask 850944
      %v1988 = vsel %vm1986, %v1955, %v1448
      %v1990 = vsel %vm1986, %v1957, %v1450
      %v1992 = vsel %vm1986, %v1959, %v1452
      %v1994 = vsel %vm1986, %v1961, %v1454
      %v1996 = vsel %vm1986, %v1963, %v1456
      %v1998 = vsel %vm1986, %v1965, %v1458
      %v2000 = vsel %vm1986, %v1967, %v1460
      %v2002 = vsel %vm1986, %v1969, %v1462
      %v2004 = vsel %vm1986, %v1971, %v1464
      %v2006 = vsel %vm1986, %v1973, %v1466
      %v2008 = vsel %vm1986, %v1975, %v1468
      %v2010 = vsel %vm1986, %v1977, %v1470
      %v2012 = vsel %vm1986, %v1979, %v1472
      %v2014 = vsel %vm1986, %v1981, %v1474
      %v2016 = vsel %vm1986, %v1983, %v1476
      %v2018 = vsel %vm1986, %v1985, %v1478
      %vm2019 = vcmask 916480
      %v2021 = vsel %vm2019, %v1988, %v1508
      %v2023 = vsel %vm2019, %v1990, %v1510
      %v2025 = vsel %vm2019, %v1992, %v1512
      %v2027 = vsel %vm2019, %v1994, %v1514
      %v2029 = vsel %vm2019, %v1996, %v1516
      %v2031 = vsel %vm2019, %v1998, %v1518
      %v2033 = vsel %vm2019, %v2000, %v1520
      %v2035 = vsel %vm2019, %v2002, %v1522
      %v2037 = vsel %vm2019, %v2004, %v1524
      %v2039 = vsel %vm2019, %v2006, %v1526
      %v2041 = vsel %vm2019, %v2008, %v1528
      %v2043 = vsel %vm2019, %v2010, %v1530
      %v2045 = vsel %vm2019, %v2012, %v1532
      %v2047 = vsel %vm2019, %v2014, %v1534
      %v2049 = vsel %vm2019, %v2016, %v1536
      %v2051 = vsel %vm2019, %v2018, %v1538
      %vm2052 = vcmask 982016
      %v2054 = vsel %vm2052, %v2021, %v1543
      %v2056 = vsel %vm2052, %v2023, %v1545
      %v2058 = vsel %vm2052, %v2025, %v1547
      %v2060 = vsel %vm2052, %v2027, %v1549
      %v2062 = vsel %vm2052, %v2029, %v1551
      %v2064 = vsel %vm2052, %v2031, %v1553
      %v2066 = vsel %vm2052, %v2033, %v1555
      %v2068 = vsel %vm2052, %v2035, %v1557
      %v2070 = vsel %vm2052, %v2037, %v1559
      %v2072 = vsel %vm2052, %v2039, %v1561
      %v2074 = vsel %vm2052, %v2041, %v1563
      %v2076 = vsel %vm2052, %v2043, %v1565
      %v2078 = vsel %vm2052, %v2045, %v1567
      %v2080 = vsel %vm2052, %v2047, %v1569
      %v2082 = vsel %vm2052, %v2049, %v1571
      %v2084 = vsel %vm2052, %v2051, %v1573
      %v2086 = vshrl.u32 %v1541, 16
      %v2088 = vshll.u32 %v1541, 16
      %v2090 = vrot.slane %v2088, 1
      %v2091 = vor.u32 %v2086, %v2090
      %2092 = vrot.lane.b32.xlu0 %v688, 8
      %v2093 = vpop.permute.xlu0 %2092
      %2094 = vrot.lane.b32.xlu0 %v695, 8
      %v2095 = vpop.permute.xlu0 %2094
      %2096 = vrot.lane.b32.xlu0 %v702, 8
      %v2097 = vpop.permute.xlu0 %2096
      %2098 = vrot.lane.b32.xlu0 %v1196, 8
      %v2099 = vpop.permute.xlu0 %2098
      %2100 = vrot.lane.b32.xlu0 %v716, 8
      %v2101 = vpop.permute.xlu0 %2100
      %2102 = vrot.lane.b32.xlu0 %v723, 8
      %v2103 = vpop.permute.xlu0 %2102
      %2104 = vrot.lane.b32.xlu0 %v730, 8
      %v2105 = vpop.permute.xlu0 %2104
      %2106 = vrot.lane.b32.xlu0 %v1203, 8
      %v2107 = vpop.permute.xlu0 %2106
      %2108 = vrot.lane.b32.xlu0 %v744, 8
      %v2109 = vpop.permute.xlu0 %2108
      %2110 = vrot.lane.b32.xlu0 %v751, 8
      %v2111 = vpop.permute.xlu0 %2110
      %2112 = vrot.lane.b32.xlu0 %v758, 8
      %v2113 = vpop.permute.xlu0 %2112
      %2114 = vrot.lane.b32.xlu0 %v1210, 8
      %v2115 = vpop.permute.xlu0 %2114
      %2116 = vrot.lane.b32.xlu0 %v1344, 8
      %v2117 = vpop.permute.xlu0 %2116
      %2118 = vrot.lane.b32.xlu0 %v1351, 8
      %v2119 = vpop.permute.xlu0 %2118
      %2120 = vrot.lane.b32.xlu0 %v1358, 8
      %v2121 = vpop.permute.xlu0 %2120
      %2122 = vrot.lane.b32.xlu0 %v2091, 8
      %v2123 = vpop.permute.xlu0 %2122
      %v2128 = vunpack.c.l.b16 %v436
      %v2129 = vunpack.c.l.b16 %v437
      %v2130 = vunpack.c.l.b16 %v438
      %v2131 = vunpack.c.l.b16 %v439
      %v2132 = vpack.c.b16 %v2128, %v2128
      %v2133 = vpack.c.b16 %v2129, %v2129
      %v2134 = vpack.c.b16 %v2130, %v2130
      %v2135 = vpack.c.b16 %v2131, %v2131
      %2136 = vrot.lane.b32.xlu0 %v639, 16
      %v2137 = vpop.permute.xlu0 %2136
      %2138 = vrot.lane.b32.xlu0 %v640, 16
      %v2139 = vpop.permute.xlu0 %2138
      %2140 = vrot.lane.b32.xlu0 %v641, 16
      %v2141 = vpop.permute.xlu0 %2140
      %2142 = vrot.lane.b32.xlu0 %v642, 16
      %v2143 = vpop.permute.xlu0 %2142
      %2144 = vrot.lane.b32.xlu0 %v643, 16
      %v2145 = vpop.permute.xlu0 %2144
      %2146 = vrot.lane.b32.xlu0 %v644, 16
      %v2147 = vpop.permute.xlu0 %2146
      %2148 = vrot.lane.b32.xlu0 %v645, 16
      %v2149 = vpop.permute.xlu0 %2148
      %2150 = vrot.lane.b32.xlu0 %v646, 16
      %v2151 = vpop.permute.xlu0 %2150
      %2152 = vrot.lane.b32.xlu0 %v1251, 16
      %v2153 = vpop.permute.xlu0 %2152
      %2154 = vrot.lane.b32.xlu0 %v1252, 16
      %v2155 = vpop.permute.xlu0 %2154
      %2156 = vrot.lane.b32.xlu0 %v1253, 16
      %v2157 = vpop.permute.xlu0 %2156
      %2158 = vrot.lane.b32.xlu0 %v1254, 16
      %v2159 = vpop.permute.xlu0 %2158
      %2160 = vrot.lane.b32.xlu0 %v2132, 16
      %v2161 = vpop.permute.xlu0 %2160
      %2162 = vrot.lane.b32.xlu0 %v2133, 16
      %v2163 = vpop.permute.xlu0 %2162
      %2164 = vrot.lane.b32.xlu0 %v2134, 16
      %v2165 = vpop.permute.xlu0 %2164
      %2166 = vrot.lane.b32.xlu0 %v2135, 16
      %v2167 = vpop.permute.xlu0 %2166
      %v2172 = vunpack.c.l.b16 %v466
      %v2173 = vunpack.c.l.b16 %v467
      %v2174 = vunpack.c.l.b16 %v468
      %v2175 = vunpack.c.l.b16 %v469
      %v2176 = vpack.c.b16 %v2172, %v2172
      %v2177 = vpack.c.b16 %v2173, %v2173
      %v2178 = vpack.c.b16 %v2174, %v2174
      %v2179 = vpack.c.b16 %v2175, %v2175
      %2180 = vrot.lane.b32.xlu0 %v559, 24
      %v2181 = vpop.permute.xlu0 %2180
      %2182 = vrot.lane.b32.xlu0 %v560, 24
      %v2183 = vpop.permute.xlu0 %2182
      %2184 = vrot.lane.b32.xlu0 %v561, 24
      %v2185 = vpop.permute.xlu0 %2184
      %2186 = vrot.lane.b32.xlu0 %v562, 24
      %v2187 = vpop.permute.xlu0 %2186
      %2188 = vrot.lane.b32.xlu0 %v563, 24
      %v2189 = vpop.permute.xlu0 %2188
      %2190 = vrot.lane.b32.xlu0 %v564, 24
      %v2191 = vpop.permute.xlu0 %2190
      %2192 = vrot.lane.b32.xlu0 %v565, 24
      %v2193 = vpop.permute.xlu0 %2192
      %2194 = vrot.lane.b32.xlu0 %v566, 24
      %v2195 = vpop.permute.xlu0 %2194
      %2196 = vrot.lane.b32.xlu0 %v1295, 24
      %v2197 = vpop.permute.xlu0 %2196
      %2198 = vrot.lane.b32.xlu0 %v1296, 24
      %v2199 = vpop.permute.xlu0 %2198
      %2200 = vrot.lane.b32.xlu0 %v1297, 24
      %v2201 = vpop.permute.xlu0 %2200
      %2202 = vrot.lane.b32.xlu0 %v1298, 24
      %v2203 = vpop.permute.xlu0 %2202
      %2204 = vrot.lane.b32.xlu0 %v2176, 24
      %v2205 = vpop.permute.xlu0 %2204
      %2206 = vrot.lane.b32.xlu0 %v2177, 24
      %v2207 = vpop.permute.xlu0 %2206
      %2208 = vrot.lane.b32.xlu0 %v2178, 24
      %v2209 = vpop.permute.xlu0 %2208
      %2210 = vrot.lane.b32.xlu0 %v2179, 24
      %v2211 = vpop.permute.xlu0 %2210
      %v2213 = vshrl.u32 %v2132, 16
      %v2215 = vshll.u32 %v2132, 16
      %v2217 = vrot.slane %v2215, 1
      %v2218 = vor.u32 %v2213, %v2217
      %v2220 = vshrl.u32 %v2133, 16
      %v2222 = vshll.u32 %v2133, 16
      %v2224 = vrot.slane %v2222, 1
      %v2225 = vor.u32 %v2220, %v2224
      %v2227 = vshrl.u32 %v2134, 16
      %v2229 = vshll.u32 %v2134, 16
      %v2231 = vrot.slane %v2229, 1
      %v2232 = vor.u32 %v2227, %v2231
      %v2234 = vshrl.u32 %v2135, 16
      %v2236 = vshll.u32 %v2135, 16
      %v2238 = vrot.slane %v2236, 1
      %v2239 = vor.u32 %v2234, %v2238
      %2240 = vrot.lane.b32.xlu0 %v709, 32
      %v2241 = vpop.permute.xlu0 %2240
      %2242 = vrot.lane.b32.xlu0 %v716, 32
      %v2243 = vpop.permute.xlu0 %2242
      %2244 = vrot.lane.b32.xlu0 %v723, 32
      %v2245 = vpop.permute.xlu0 %2244
      %2246 = vrot.lane.b32.xlu0 %v730, 32
      %v2247 = vpop.permute.xlu0 %2246
      %2248 = vrot.lane.b32.xlu0 %v737, 32
      %v2249 = vpop.permute.xlu0 %2248
      %2250 = vrot.lane.b32.xlu0 %v744, 32
      %v2251 = vpop.permute.xlu0 %2250
      %2252 = vrot.lane.b32.xlu0 %v751, 32
      %v2253 = vpop.permute.xlu0 %2252
      %2254 = vrot.lane.b32.xlu0 %v758, 32
      %v2255 = vpop.permute.xlu0 %2254
      %2256 = vrot.lane.b32.xlu0 %v1337, 32
      %v2257 = vpop.permute.xlu0 %2256
      %2258 = vrot.lane.b32.xlu0 %v1344, 32
      %v2259 = vpop.permute.xlu0 %2258
      %2260 = vrot.lane.b32.xlu0 %v1351, 32
      %v2261 = vpop.permute.xlu0 %2260
      %2262 = vrot.lane.b32.xlu0 %v1358, 32
      %v2263 = vpop.permute.xlu0 %2262
      %2264 = vrot.lane.b32.xlu0 %v2218, 32
      %v2265 = vpop.permute.xlu0 %2264
      %2266 = vrot.lane.b32.xlu0 %v2225, 32
      %v2267 = vpop.permute.xlu0 %2266
      %2268 = vrot.lane.b32.xlu0 %v2232, 32
      %v2269 = vpop.permute.xlu0 %2268
      %2270 = vrot.lane.b32.xlu0 %v2239, 32
      %v2271 = vpop.permute.xlu0 %2270
      %v2276 = vunpack.c.l.b16 %v491
      %v2277 = vunpack.c.l.b16 %v492
      %v2278 = vunpack.c.l.b16 %v493
      %v2279 = vunpack.c.l.b16 %v494
      %v2280 = vpack.c.b16 %v2276, %v2276
      %v2281 = vpack.c.b16 %v2277, %v2277
      %v2282 = vpack.c.b16 %v2278, %v2278
      %v2283 = vpack.c.b16 %v2279, %v2279
      %2284 = vrot.lane.b32.xlu0 %v831, 40
      %v2285 = vpop.permute.xlu0 %2284
      %2286 = vrot.lane.b32.xlu0 %v832, 40
      %v2287 = vpop.permute.xlu0 %2286
      %2288 = vrot.lane.b32.xlu0 %v833, 40
      %v2289 = vpop.permute.xlu0 %2288
      %2290 = vrot.lane.b32.xlu0 %v834, 40
      %v2291 = vpop.permute.xlu0 %2290
      %2292 = vrot.lane.b32.xlu0 %v835, 40
      %v2293 = vpop.permute.xlu0 %2292
      %2294 = vrot.lane.b32.xlu0 %v836, 40
      %v2295 = vpop.permute.xlu0 %2294
      %2296 = vrot.lane.b32.xlu0 %v837, 40
      %v2297 = vpop.permute.xlu0 %2296
      %2298 = vrot.lane.b32.xlu0 %v838, 40
      %v2299 = vpop.permute.xlu0 %2298
      %2300 = vrot.lane.b32.xlu0 %v1399, 40
      %v2301 = vpop.permute.xlu0 %2300
      %2302 = vrot.lane.b32.xlu0 %v1400, 40
      %v2303 = vpop.permute.xlu0 %2302
      %2304 = vrot.lane.b32.xlu0 %v1401, 40
      %v2305 = vpop.permute.xlu0 %2304
      %2306 = vrot.lane.b32.xlu0 %v1402, 40
      %v2307 = vpop.permute.xlu0 %2306
      %2308 = vrot.lane.b32.xlu0 %v2280, 40
      %v2309 = vpop.permute.xlu0 %2308
      %2310 = vrot.lane.b32.xlu0 %v2281, 40
      %v2311 = vpop.permute.xlu0 %2310
      %2312 = vrot.lane.b32.xlu0 %v2282, 40
      %v2313 = vpop.permute.xlu0 %2312
      %2314 = vrot.lane.b32.xlu0 %v2283, 40
      %v2315 = vpop.permute.xlu0 %2314
      %v2320 = vunpack.c.l.b16 %v515
      %v2321 = vunpack.c.l.b16 %v516
      %v2322 = vunpack.c.l.b16 %v517
      %v2323 = vunpack.c.l.b16 %v518
      %v2324 = vpack.c.b16 %v2320, %v2320
      %v2325 = vpack.c.b16 %v2321, %v2321
      %v2326 = vpack.c.b16 %v2322, %v2322
      %v2327 = vpack.c.b16 %v2323, %v2323
      %2328 = vrot.lane.b32.xlu0 %v911, 48
      %v2329 = vpop.permute.xlu0 %2328
      %2330 = vrot.lane.b32.xlu0 %v912, 48
      %v2331 = vpop.permute.xlu0 %2330
      %2332 = vrot.lane.b32.xlu0 %v913, 48
      %v2333 = vpop.permute.xlu0 %2332
      %2334 = vrot.lane.b32.xlu0 %v914, 48
      %v2335 = vpop.permute.xlu0 %2334
      %2336 = vrot.lane.b32.xlu0 %v915, 48
      %v2337 = vpop.permute.xlu0 %2336
      %2338 = vrot.lane.b32.xlu0 %v916, 48
      %v2339 = vpop.permute.xlu0 %2338
      %2340 = vrot.lane.b32.xlu0 %v917, 48
      %v2341 = vpop.permute.xlu0 %2340
      %2342 = vrot.lane.b32.xlu0 %v918, 48
      %v2343 = vpop.permute.xlu0 %2342
      %2344 = vrot.lane.b32.xlu0 %v1443, 48
      %v2345 = vpop.permute.xlu0 %2344
      %2346 = vrot.lane.b32.xlu0 %v1444, 48
      %v2347 = vpop.permute.xlu0 %2346
      %2348 = vrot.lane.b32.xlu0 %v1445, 48
      %v2349 = vpop.permute.xlu0 %2348
      %2350 = vrot.lane.b32.xlu0 %v1446, 48
      %v2351 = vpop.permute.xlu0 %2350
      %2352 = vrot.lane.b32.xlu0 %v2324, 48
      %v2353 = vpop.permute.xlu0 %2352
      %2354 = vrot.lane.b32.xlu0 %v2325, 48
      %v2355 = vpop.permute.xlu0 %2354
      %2356 = vrot.lane.b32.xlu0 %v2326, 48
      %v2357 = vpop.permute.xlu0 %2356
      %2358 = vrot.lane.b32.xlu0 %v2327, 48
      %v2359 = vpop.permute.xlu0 %2358
      %v2361 = vshrl.u32 %v2280, 16
      %v2363 = vshll.u32 %v2280, 16
      %v2365 = vrot.slane %v2363, 1
      %v2366 = vor.u32 %v2361, %v2365
      %v2368 = vshrl.u32 %v2281, 16
      %v2370 = vshll.u32 %v2281, 16
      %v2372 = vrot.slane %v2370, 1
      %v2373 = vor.u32 %v2368, %v2372
      %v2375 = vshrl.u32 %v2282, 16
      %v2377 = vshll.u32 %v2282, 16
      %v2379 = vrot.slane %v2377, 1
      %v2380 = vor.u32 %v2375, %v2379
      %v2382 = vshrl.u32 %v2283, 16
      %v2384 = vshll.u32 %v2283, 16
      %v2386 = vrot.slane %v2384, 1
      %v2387 = vor.u32 %v2382, %v2386
      %2388 = vrot.lane.b32.xlu0 %v1013, 56
      %v2389 = vpop.permute.xlu0 %2388
      %2390 = vrot.lane.b32.xlu0 %v1020, 56
      %v2391 = vpop.permute.xlu0 %2390
      %2392 = vrot.lane.b32.xlu0 %v1027, 56
      %v2393 = vpop.permute.xlu0 %2392
      %2394 = vrot.lane.b32.xlu0 %v1034, 56
      %v2395 = vpop.permute.xlu0 %2394
      %2396 = vrot.lane.b32.xlu0 %v1041, 56
      %v2397 = vpop.permute.xlu0 %2396
      %2398 = vrot.lane.b32.xlu0 %v1048, 56
      %v2399 = vpop.permute.xlu0 %2398
      %2400 = vrot.lane.b32.xlu0 %v1055, 56
      %v2401 = vpop.permute.xlu0 %2400
      %2402 = vrot.lane.b32.xlu0 %v1062, 56
      %v2403 = vpop.permute.xlu0 %2402
      %2404 = vrot.lane.b32.xlu0 %v1485, 56
      %v2405 = vpop.permute.xlu0 %2404
      %2406 = vrot.lane.b32.xlu0 %v1492, 56
      %v2407 = vpop.permute.xlu0 %2406
      %2408 = vrot.lane.b32.xlu0 %v1499, 56
      %v2409 = vpop.permute.xlu0 %2408
      %2410 = vrot.lane.b32.xlu0 %v1506, 56
      %v2411 = vpop.permute.xlu0 %2410
      %2412 = vrot.lane.b32.xlu0 %v2366, 56
      %v2413 = vpop.permute.xlu0 %2412
      %2414 = vrot.lane.b32.xlu0 %v2373, 56
      %v2415 = vpop.permute.xlu0 %2414
      %2416 = vrot.lane.b32.xlu0 %v2380, 56
      %v2417 = vpop.permute.xlu0 %2416
      %2418 = vrot.lane.b32.xlu0 %v2387, 56
      %v2419 = vpop.permute.xlu0 %2418
      %v2421 = vunpack.c.l.b16 %v440
      %v2422 = vpack.c.b16 %v2421, %v2421
      %2423 = vrot.lane.b32.xlu0 %v640, 64
      %v2424 = vpop.permute.xlu0 %2423
      %2425 = vrot.lane.b32.xlu0 %v641, 64
      %v2426 = vpop.permute.xlu0 %2425
      %2427 = vrot.lane.b32.xlu0 %v642, 64
      %v2428 = vpop.permute.xlu0 %2427
      %2429 = vrot.lane.b32.xlu0 %v1105, 64
      %v2430 = vpop.permute.xlu0 %2429
      %2431 = vrot.lane.b32.xlu0 %v644, 64
      %v2432 = vpop.permute.xlu0 %2431
      %2433 = vrot.lane.b32.xlu0 %v645, 64
      %v2434 = vpop.permute.xlu0 %2433
      %2435 = vrot.lane.b32.xlu0 %v646, 64
      %v2436 = vpop.permute.xlu0 %2435
      %2437 = vrot.lane.b32.xlu0 %v1106, 64
      %v2438 = vpop.permute.xlu0 %2437
      %2439 = vrot.lane.b32.xlu0 %v1252, 64
      %v2440 = vpop.permute.xlu0 %2439
      %2441 = vrot.lane.b32.xlu0 %v1253, 64
      %v2442 = vpop.permute.xlu0 %2441
      %2443 = vrot.lane.b32.xlu0 %v1254, 64
      %v2444 = vpop.permute.xlu0 %2443
      %2445 = vrot.lane.b32.xlu0 %v1541, 64
      %v2446 = vpop.permute.xlu0 %2445
      %2447 = vrot.lane.b32.xlu0 %v2133, 64
      %v2448 = vpop.permute.xlu0 %2447
      %2449 = vrot.lane.b32.xlu0 %v2134, 64
      %v2450 = vpop.permute.xlu0 %2449
      %2451 = vrot.lane.b32.xlu0 %v2135, 64
      %v2452 = vpop.permute.xlu0 %2451
      %2453 = vrot.lane.b32.xlu0 %v2422, 64
      %v2454 = vpop.permute.xlu0 %2453
      %v2457 = vunpack.c.l.b16 %v465
      %v2458 = vunpack.c.l.b16 %v470
      %v2459 = vpack.c.b16 %v2457, %v2457
      %v2460 = vpack.c.b16 %v2458, %v2458
      %2461 = vrot.lane.b32.xlu0 %v560, 72
      %v2462 = vpop.permute.xlu0 %2461
      %2463 = vrot.lane.b32.xlu0 %v561, 72
      %v2464 = vpop.permute.xlu0 %2463
      %2465 = vrot.lane.b32.xlu0 %v562, 72
      %v2466 = vpop.permute.xlu0 %2465
      %2467 = vrot.lane.b32.xlu0 %v1149, 72
      %v2468 = vpop.permute.xlu0 %2467
      %2469 = vrot.lane.b32.xlu0 %v564, 72
      %v2470 = vpop.permute.xlu0 %2469
      %2471 = vrot.lane.b32.xlu0 %v565, 72
      %v2472 = vpop.permute.xlu0 %2471
      %2473 = vrot.lane.b32.xlu0 %v566, 72
      %v2474 = vpop.permute.xlu0 %2473
      %2475 = vrot.lane.b32.xlu0 %v1150, 72
      %v2476 = vpop.permute.xlu0 %2475
      %2477 = vrot.lane.b32.xlu0 %v1296, 72
      %v2478 = vpop.permute.xlu0 %2477
      %2479 = vrot.lane.b32.xlu0 %v1297, 72
      %v2480 = vpop.permute.xlu0 %2479
      %2481 = vrot.lane.b32.xlu0 %v1298, 72
      %v2482 = vpop.permute.xlu0 %2481
      %2483 = vrot.lane.b32.xlu0 %v2459, 72
      %v2484 = vpop.permute.xlu0 %2483
      %2485 = vrot.lane.b32.xlu0 %v2177, 72
      %v2486 = vpop.permute.xlu0 %2485
      %2487 = vrot.lane.b32.xlu0 %v2178, 72
      %v2488 = vpop.permute.xlu0 %2487
      %2489 = vrot.lane.b32.xlu0 %v2179, 72
      %v2490 = vpop.permute.xlu0 %2489
      %2491 = vrot.lane.b32.xlu0 %v2460, 72
      %v2492 = vpop.permute.xlu0 %2491
      %v2494 = vshrl.u32 %v2422, 16
      %v2496 = vshll.u32 %v2422, 16
      %v2498 = vrot.slane %v2496, 1
      %v2499 = vor.u32 %v2494, %v2498
      %2500 = vrot.lane.b32.xlu0 %v716, 80
      %v2501 = vpop.permute.xlu0 %2500
      %2502 = vrot.lane.b32.xlu0 %v723, 80
      %v2503 = vpop.permute.xlu0 %2502
      %2504 = vrot.lane.b32.xlu0 %v730, 80
      %v2505 = vpop.permute.xlu0 %2504
      %2506 = vrot.lane.b32.xlu0 %v1203, 80
      %v2507 = vpop.permute.xlu0 %2506
      %2508 = vrot.lane.b32.xlu0 %v744, 80
      %v2509 = vpop.permute.xlu0 %2508
      %2510 = vrot.lane.b32.xlu0 %v751, 80
      %v2511 = vpop.permute.xlu0 %2510
      %2512 = vrot.lane.b32.xlu0 %v758, 80
      %v2513 = vpop.permute.xlu0 %2512
      %2514 = vrot.lane.b32.xlu0 %v1210, 80
      %v2515 = vpop.permute.xlu0 %2514
      %2516 = vrot.lane.b32.xlu0 %v1344, 80
      %v2517 = vpop.permute.xlu0 %2516
      %2518 = vrot.lane.b32.xlu0 %v1351, 80
      %v2519 = vpop.permute.xlu0 %2518
      %2520 = vrot.lane.b32.xlu0 %v1358, 80
      %v2521 = vpop.permute.xlu0 %2520
      %2522 = vrot.lane.b32.xlu0 %v2091, 80
      %v2523 = vpop.permute.xlu0 %2522
      %2524 = vrot.lane.b32.xlu0 %v2225, 80
      %v2525 = vpop.permute.xlu0 %2524
      %2526 = vrot.lane.b32.xlu0 %v2232, 80
      %v2527 = vpop.permute.xlu0 %2526
      %2528 = vrot.lane.b32.xlu0 %v2239, 80
      %v2529 = vpop.permute.xlu0 %2528
      %2530 = vrot.lane.b32.xlu0 %v2499, 80
      %v2531 = vpop.permute.xlu0 %2530
      %v2534 = vsel %vm1574, %v447, %v2093
      %v2537 = vsel %vm1574, %v448, %v2095
      %v2540 = vsel %vm1574, %v449, %v2097
      %v2543 = vsel %vm1574, %v450, %v2099
      %v2546 = vsel %vm1574, %v452, %v2101
      %v2549 = vsel %vm1574, %v453, %v2103
      %v2552 = vsel %vm1574, %v454, %v2105
      %v2555 = vsel %vm1574, %v455, %v2107
      %v2558 = vsel %vm1574, %v457, %v2109
      %v2561 = vsel %vm1574, %v458, %v2111
      %v2564 = vsel %vm1574, %v459, %v2113
      %v2567 = vsel %vm1574, %v460, %v2115
      %v2570 = vsel %vm1574, %v462, %v2117
      %v2573 = vsel %vm1574, %v463, %v2119
      %v2576 = vsel %vm1574, %v464, %v2121
      %v2579 = vsel %vm1574, %v465, %v2123
      %v2581 = vsel %vm1623, %v2534, %v2137
      %v2583 = vsel %vm1623, %v2537, %v2139
      %v2585 = vsel %vm1623, %v2540, %v2141
      %v2587 = vsel %vm1623, %v2543, %v2143
      %v2589 = vsel %vm1623, %v2546, %v2145
      %v2591 = vsel %vm1623, %v2549, %v2147
      %v2593 = vsel %vm1623, %v2552, %v2149
      %v2595 = vsel %vm1623, %v2555, %v2151
      %v2597 = vsel %vm1623, %v2558, %v2153
      %v2599 = vsel %vm1623, %v2561, %v2155
      %v2601 = vsel %vm1623, %v2564, %v2157
      %v2603 = vsel %vm1623, %v2567, %v2159
      %v2605 = vsel %vm1623, %v2570, %v2161
      %v2607 = vsel %vm1623, %v2573, %v2163
      %v2609 = vsel %vm1623, %v2576, %v2165
      %v2611 = vsel %vm1623, %v2579, %v2167
      %v2613 = vsel %vm1656, %v2581, %v2181
      %v2615 = vsel %vm1656, %v2583, %v2183
      %v2617 = vsel %vm1656, %v2585, %v2185
      %v2619 = vsel %vm1656, %v2587, %v2187
      %v2621 = vsel %vm1656, %v2589, %v2189
      %v2623 = vsel %vm1656, %v2591, %v2191
      %v2625 = vsel %vm1656, %v2593, %v2193
      %v2627 = vsel %vm1656, %v2595, %v2195
      %v2629 = vsel %vm1656, %v2597, %v2197
      %v2631 = vsel %vm1656, %v2599, %v2199
      %v2633 = vsel %vm1656, %v2601, %v2201
      %v2635 = vsel %vm1656, %v2603, %v2203
      %v2637 = vsel %vm1656, %v2605, %v2205
      %v2639 = vsel %vm1656, %v2607, %v2207
      %v2641 = vsel %vm1656, %v2609, %v2209
      %v2643 = vsel %vm1656, %v2611, %v2211
      %v2645 = vsel %vm1689, %v2613, %v2241
      %v2647 = vsel %vm1689, %v2615, %v2243
      %v2649 = vsel %vm1689, %v2617, %v2245
      %v2651 = vsel %vm1689, %v2619, %v2247
      %v2653 = vsel %vm1689, %v2621, %v2249
      %v2655 = vsel %vm1689, %v2623, %v2251
      %v2657 = vsel %vm1689, %v2625, %v2253
      %v2659 = vsel %vm1689, %v2627, %v2255
      %v2661 = vsel %vm1689, %v2629, %v2257
      %v2663 = vsel %vm1689, %v2631, %v2259
      %v2665 = vsel %vm1689, %v2633, %v2261
      %v2667 = vsel %vm1689, %v2635, %v2263
      %v2669 = vsel %vm1689, %v2637, %v2265
      %v2671 = vsel %vm1689, %v2639, %v2267
      %v2673 = vsel %vm1689, %v2641, %v2269
      %v2675 = vsel %vm1689, %v2643, %v2271
      %v2677 = vsel %vm1722, %v2645, %v2285
      %v2679 = vsel %vm1722, %v2647, %v2287
      %v2681 = vsel %vm1722, %v2649, %v2289
      %v2683 = vsel %vm1722, %v2651, %v2291
      %v2685 = vsel %vm1722, %v2653, %v2293
      %v2687 = vsel %vm1722, %v2655, %v2295
      %v2689 = vsel %vm1722, %v2657, %v2297
      %v2691 = vsel %vm1722, %v2659, %v2299
      %v2693 = vsel %vm1722, %v2661, %v2301
      %v2695 = vsel %vm1722, %v2663, %v2303
      %v2697 = vsel %vm1722, %v2665, %v2305
      %v2699 = vsel %vm1722, %v2667, %v2307
      %v2701 = vsel %vm1722, %v2669, %v2309
      %v2703 = vsel %vm1722, %v2671, %v2311
      %v2705 = vsel %vm1722, %v2673, %v2313
      %v2707 = vsel %vm1722, %v2675, %v2315
      %v2709 = vsel %vm1755, %v2677, %v2329
      %v2711 = vsel %vm1755, %v2679, %v2331
      %v2713 = vsel %vm1755, %v2681, %v2333
      %v2715 = vsel %vm1755, %v2683, %v2335
      %v2717 = vsel %vm1755, %v2685, %v2337
      %v2719 = vsel %vm1755, %v2687, %v2339
      %v2721 = vsel %vm1755, %v2689, %v2341
      %v2723 = vsel %vm1755, %v2691, %v2343
      %v2725 = vsel %vm1755, %v2693, %v2345
      %v2727 = vsel %vm1755, %v2695, %v2347
      %v2729 = vsel %vm1755, %v2697, %v2349
      %v2731 = vsel %vm1755, %v2699, %v2351
      %v2733 = vsel %vm1755, %v2701, %v2353
      %v2735 = vsel %vm1755, %v2703, %v2355
      %v2737 = vsel %vm1755, %v2705, %v2357
      %v2739 = vsel %vm1755, %v2707, %v2359
      %v2741 = vsel %vm1788, %v2709, %v2389
      %v2743 = vsel %vm1788, %v2711, %v2391
      %v2745 = vsel %vm1788, %v2713, %v2393
      %v2747 = vsel %vm1788, %v2715, %v2395
      %v2749 = vsel %vm1788, %v2717, %v2397
      %v2751 = vsel %vm1788, %v2719, %v2399
      %v2753 = vsel %vm1788, %v2721, %v2401
      %v2755 = vsel %vm1788, %v2723, %v2403
      %v2757 = vsel %vm1788, %v2725, %v2405
      %v2759 = vsel %vm1788, %v2727, %v2407
      %v2761 = vsel %vm1788, %v2729, %v2409
      %v2763 = vsel %vm1788, %v2731, %v2411
      %v2765 = vsel %vm1788, %v2733, %v2413
      %v2767 = vsel %vm1788, %v2735, %v2415
      %v2769 = vsel %vm1788, %v2737, %v2417
      %v2771 = vsel %vm1788, %v2739, %v2419
      %v2773 = vsel %vm1821, %v2741, %v2424
      %v2775 = vsel %vm1821, %v2743, %v2426
      %v2777 = vsel %vm1821, %v2745, %v2428
      %v2779 = vsel %vm1821, %v2747, %v2430
      %v2781 = vsel %vm1821, %v2749, %v2432
      %v2783 = vsel %vm1821, %v2751, %v2434
      %v2785 = vsel %vm1821, %v2753, %v2436
      %v2787 = vsel %vm1821, %v2755, %v2438
      %v2789 = vsel %vm1821, %v2757, %v2440
      %v2791 = vsel %vm1821, %v2759, %v2442
      %v2793 = vsel %vm1821, %v2761, %v2444
      %v2795 = vsel %vm1821, %v2763, %v2446
      %v2797 = vsel %vm1821, %v2765, %v2448
      %v2799 = vsel %vm1821, %v2767, %v2450
      %v2801 = vsel %vm1821, %v2769, %v2452
      %v2803 = vsel %vm1821, %v2771, %v2454
      %v2805 = vsel %vm1854, %v2773, %v2462
      %v2807 = vsel %vm1854, %v2775, %v2464
      %v2809 = vsel %vm1854, %v2777, %v2466
      %v2811 = vsel %vm1854, %v2779, %v2468
      %v2813 = vsel %vm1854, %v2781, %v2470
      %v2815 = vsel %vm1854, %v2783, %v2472
      %v2817 = vsel %vm1854, %v2785, %v2474
      %v2819 = vsel %vm1854, %v2787, %v2476
      %v2821 = vsel %vm1854, %v2789, %v2478
      %v2823 = vsel %vm1854, %v2791, %v2480
      %v2825 = vsel %vm1854, %v2793, %v2482
      %v2827 = vsel %vm1854, %v2795, %v2484
      %v2829 = vsel %vm1854, %v2797, %v2486
      %v2831 = vsel %vm1854, %v2799, %v2488
      %v2833 = vsel %vm1854, %v2801, %v2490
      %v2835 = vsel %vm1854, %v2803, %v2492
      %v2837 = vsel %vm1887, %v2805, %v2501
      %v2839 = vsel %vm1887, %v2807, %v2503
      %v2841 = vsel %vm1887, %v2809, %v2505
      %v2843 = vsel %vm1887, %v2811, %v2507
      %v2845 = vsel %vm1887, %v2813, %v2509
      %v2847 = vsel %vm1887, %v2815, %v2511
      %v2849 = vsel %vm1887, %v2817, %v2513
      %v2851 = vsel %vm1887, %v2819, %v2515
      %v2853 = vsel %vm1887, %v2821, %v2517
      %v2855 = vsel %vm1887, %v2823, %v2519
      %v2857 = vsel %vm1887, %v2825, %v2521
      %v2859 = vsel %vm1887, %v2827, %v2523
      %v2861 = vsel %vm1887, %v2829, %v2525
      %v2863 = vsel %vm1887, %v2831, %v2527
      %v2865 = vsel %vm1887, %v2833, %v2529
      %v2867 = vsel %vm1887, %v2835, %v2531
      %v2884 = vrot.slane %v2837, 6
      %v2885 = vrot.slane %v2839, 6
      %v2886 = vrot.slane %v2841, 6
      %v2887 = vrot.slane %v2843, 6
      %v2888 = vrot.slane %v2845, 6
      %v2889 = vrot.slane %v2847, 6
      %v2890 = vrot.slane %v2849, 6
      %v2891 = vrot.slane %v2851, 6
      %v2892 = vrot.slane %v2853, 6
      %v2893 = vrot.slane %v2855, 6
      %v2894 = vrot.slane %v2857, 6
      %v2895 = vrot.slane %v2859, 6
      %v2896 = vrot.slane %v2861, 6
      %v2897 = vrot.slane %v2863, 6
      %v2898 = vrot.slane %v2865, 6
      %v2899 = vrot.slane %v2867, 6
      %vm2900 = vcmask 1041408
      %v2902 = vsel %vm2900, %v2054, %v2884
      %v2904 = vsel %vm2900, %v2056, %v2885
      %v2906 = vsel %vm2900, %v2058, %v2886
      %v2908 = vsel %vm2900, %v2060, %v2887
      %v2910 = vsel %vm2900, %v2062, %v2888
      %v2912 = vsel %vm2900, %v2064, %v2889
      %v2914 = vsel %vm2900, %v2066, %v2890
      %v2916 = vsel %vm2900, %v2068, %v2891
      %v2918 = vsel %vm2900, %v2070, %v2892
      %v2920 = vsel %vm2900, %v2072, %v2893
      %v2922 = vsel %vm2900, %v2074, %v2894
      %v2924 = vsel %vm2900, %v2076, %v2895
      %v2926 = vsel %vm2900, %v2078, %v2896
      %v2928 = vsel %vm2900, %v2080, %v2897
      %v2930 = vsel %vm2900, %v2082, %v2898
      %v2932 = vsel %vm2900, %v2084, %v2899
      %v2933 = vld [vmem:[%s4] sm:$0xf]
      %v2934 = vld [vmem:[%s4 + $0x4] sm:$0xf]
      %v2935 = vld [vmem:[%s4 + $0x8] sm:$0xf]
      %v2936 = vld [vmem:[%s4 + $0xc] sm:$0xf]
      %v2937 = vld [vmem:[%s4 + $0x10] sm:$0xf]
      %v2938 = vld [vmem:[%s4 + $0x14] sm:$0xf]
      %v2939 = vld [vmem:[%s4 + $0x18] sm:$0xf]
      %v2940 = vld [vmem:[%s4 + $0x1c] sm:$0xf]
      %v2941 = vld [vmem:[%s4 + $0x20] sm:$0xf]
      %v2942 = vld [vmem:[%s4 + $0x24] sm:$0xf]
      %v2943 = vld [vmem:[%s4 + $0x28] sm:$0xf]
      %v2944 = vld [vmem:[%s4 + $0x2c] sm:$0xf]
      %v2945 = vld [vmem:[%s4 + $0x30] sm:$0xf]
      %v2946 = vld [vmem:[%s4 + $0x34] sm:$0xf]
      %v2947 = vld [vmem:[%s4 + $0x38] sm:$0xf]
      %v2948 = vld [vmem:[%s4 + $0x3c] sm:$0xf]
      %v2949 = vld [vmem:[%s4 + $0x40] sm:$0xf]
      %v2950 = vld [vmem:[%s4 + $0x44] sm:$0xf]
      %v2951 = vld [vmem:[%s4 + $0x48] sm:$0xf]
      %v2952 = vld [vmem:[%s4 + $0x4c] sm:$0xf]
      %v2953 = vld [vmem:[%s4 + $0x50] sm:$0xf]
      %v2954 = vld [vmem:[%s4 + $0x54] sm:$0xf]
      %v2955 = vld [vmem:[%s4 + $0x58] sm:$0xf]
      %v2956 = vld [vmem:[%s4 + $0x5c] sm:$0xf]
      %v2957 = vld [vmem:[%s4 + $0x60] sm:$0xf]
      %v2958 = vld [vmem:[%s4 + $0x64] sm:$0xf]
      %v2959 = vld [vmem:[%s4 + $0x68] sm:$0xf]
      %v2960 = vld [vmem:[%s5] sm:$0x1]
      %v2962 = vperm.slane %v2960, 0
      %2964 = vst [vmem:[#allocation1] ss:$4 sm:$0xff] %v2902
      %s2965 = scalar_lea.vmem [#allocation1], 1
      %2966 = vst [vmem:[%s2965] ss:$4 sm:$0xff] %v2904
      %s2967 = scalar_lea.vmem [#allocation1], 2
      %2968 = vst [vmem:[%s2967] ss:$4 sm:$0xff] %v2906
      %s2969 = scalar_lea.vmem [#allocation1], 3
      %2970 = vst [vmem:[%s2969] ss:$4 sm:$0xff] %v2908
      %s2971 = scalar_lea.vmem [#allocation1], 32
      %2972 = vst [vmem:[%s2971] ss:$4 sm:$0xff] %v2910
      %s2973 = scalar_lea.vmem [#allocation1], 33
      %2974 = vst [vmem:[%s2973] ss:$4 sm:$0xff] %v2912
      %s2975 = scalar_lea.vmem [#allocation1], 34
      %2976 = vst [vmem:[%s2975] ss:$4 sm:$0xff] %v2914
      %s2977 = scalar_lea.vmem [#allocation1], 35
      %2978 = vst [vmem:[%s2977] ss:$4 sm:$0xff] %v2916
      %v2979 = vld.sshfl [vmem:[#allocation1] sm:$0xff pattern:$0x73625140]
      %v2980 = vld.sshfl [vmem:[#allocation1 + $0x8] sm:$0xff pattern:$0x73625140]
      %v2981 = vld.sshfl [vmem:[#allocation1 + $0x20] sm:$0xff pattern:$0x73625140]
      %v2982 = vld.sshfl [vmem:[#allocation1 + $0x28] sm:$0xff pattern:$0x73625140]
      %2983 = vst [vmem:[#allocation1] ss:$4 sm:$0xff] %v2918
      %2984 = vst [vmem:[%s2965] ss:$4 sm:$0xff] %v2920
      %2985 = vst [vmem:[%s2967] ss:$4 sm:$0xff] %v2922
      %2986 = vst [vmem:[%s2969] ss:$4 sm:$0xff] %v2924
      %2987 = vst [vmem:[%s2971] ss:$4 sm:$0xff] %v2926
      %2988 = vst [vmem:[%s2973] ss:$4 sm:$0xff] %v2928
      %2989 = vst [vmem:[%s2975] ss:$4 sm:$0xff] %v2930
      %2990 = vst [vmem:[%s2977] ss:$4 sm:$0xff] %v2932
      %v2991 = vld.sshfl [vmem:[#allocation1] sm:$0xff pattern:$0x73625140]
      %v2992 = vld.sshfl [vmem:[#allocation1 + $0x8] sm:$0xff pattern:$0x73625140]
      %v2993 = vld.sshfl [vmem:[#allocation1 + $0x20] sm:$0xff pattern:$0x73625140]
      %v2994 = vld.sshfl [vmem:[#allocation1 + $0x28] sm:$0xff pattern:$0x73625140]
      %v3026 = vunpack.c.l.b16 %v2933
      %v3027 = vunpack.c.l.b16 %v2934
      %v3028 = vunpack.c.l.b16 %v2935
      %v3029 = vunpack.c.l.b16 %v2936
      %v3030 = vunpack.c.l.b16 %v2937
      %v3031 = vunpack.c.l.b16 %v2938
      %v3032 = vunpack.c.l.b16 %v2939
      %v3033 = vunpack.c.l.b16 %v2940
      %v3034 = vunpack.c.l.b16 %v2941
      %v3035 = vunpack.c.l.b16 %v2942
      %v3036 = vunpack.c.l.b16 %v2943
      %v3037 = vunpack.c.l.b16 %v2944
      %v3038 = vunpack.c.l.b16 %v2945
      %v3039 = vunpack.c.l.b16 %v2946
      %v3040 = vunpack.c.l.b16 %v2947
      %v3041 = vunpack.c.l.b16 %v2948
      %v3042 = vunpack.c.l.b16 %v2949
      %v3043 = vunpack.c.l.b16 %v2950
      %v3044 = vunpack.c.l.b16 %v2951
      %v3045 = vunpack.c.l.b16 %v2952
      %v3046 = vunpack.c.l.b16 %v2953
      %v3047 = vunpack.c.l.b16 %v2954
      %v3048 = vunpack.c.l.b16 %v2955
      %v3049 = vunpack.c.l.b16 %v2956
      %v3050 = vunpack.c.l.b16 %v2957
      %v3051 = vunpack.c.l.b16 %v2958
      %v3052 = vunpack.c.l.b16 %v2959
      %v3053 = vpack.c.b16 %v3027, %v3026
      %v3054 = vpack.c.b16 %v3029, %v3028
      %v3055 = vpack.c.b16 %v3031, %v3030
      %v3056 = vpack.c.b16 %v3033, %v3032
      %v3057 = vpack.c.b16 %v3035, %v3034
      %v3058 = vpack.c.b16 %v3037, %v3036
      %v3059 = vpack.c.b16 %v3039, %v3038
      %v3060 = vpack.c.b16 %v3041, %v3040
      %v3061 = vpack.c.b16 %v3043, %v3042
      %v3062 = vpack.c.b16 %v3045, %v3044
      %v3063 = vpack.c.b16 %v3047, %v3046
      %v3064 = vpack.c.b16 %v3049, %v3048
      %v3065 = vpack.c.b16 %v3051, %v3050
      %v3066 = vpack.c.b16 %v3052, %v3052
      %v3080 = vsel %vm1920, %v2980, 0
      %v3082 = vsel %vm1920, %v2982, 0
      %v3084 = vsel %vm1920, %v2992, 0
      %v3086 = vsel %vm1920, %v2994, 0
      %vm3088 = vcmask 1043456
      %v3090 = vsel %vm3088, %v3066, 0
      %3092 = vmatpush.bf16.msra.mxu0 %v3060
      %3093 = vmatpush.bf16.msra.mxu0 %v3059
      %3094 = vmatpush.bf16.msra.mxu0 %v3058
      %3095 = vmatpush.bf16.msra.mxu0 %v3057
      %3096 = vmatpush.bf16.msra.mxu0 %v3056
      %3097 = vmatpush.bf16.msra.mxu0 %v3055
      %3098 = vmatpush.bf16.msra.mxu0 %v3054
      %3099 = vmatpush.bf16.msra.mxu0 %v3053
      %3100 = vmatmul.bf16.gmra.mxu0 %v2979
      %v3101 = vpop.f32.mrf.mxu0
      %v3102 = vadd.f32 %v2962, %v3101
      %v3103 = vpop.f32.mrf.mxu0
      %v3104 = vadd.f32 %v2962, %v3103
      %3105 = vmatmul.bf16.gmra.mxu0 %v2981
      %v3106 = vpop.f32.mrf.mxu0
      %v3107 = vadd.f32 %v2962, %v3106
      %v3108 = vpop.f32.mrf.mxu0
      %v3109 = vadd.f32 %v2962, %v3108
      %3110 = vmatmul.bf16.gmra.mxu0 %v2991
      %v3111 = vpop.f32.mrf.mxu0
      %v3112 = vadd.f32 %v2962, %v3111
      %v3113 = vpop.f32.mrf.mxu0
      %v3114 = vadd.f32 %v2962, %v3113
      %3115 = vmatmul.bf16.gmra.mxu0 %v2993
      %v3116 = vpop.f32.mrf.mxu0
      %v3117 = vadd.f32 %v2962, %v3116
      %v3118 = vpop.f32.mrf.mxu0
      %v3119 = vadd.f32 %v2962, %v3118
      %3120 = vdwg.mxu0
      %3121 = vmatpush.bf16.msra.mxu0 0
      %3122 = vmatpush.bf16.msra.mxu0 0
      %3123 = vmatpush.bf16.msra.mxu0 %v3090
      %3124 = vmatpush.bf16.msra.mxu0 %v3065
      %3125 = vmatpush.bf16.msra.mxu0 %v3064
      %3126 = vmatpush.bf16.msra.mxu0 %v3063
      %3127 = vmatpush.bf16.msra.mxu0 %v3062
      %3128 = vmatpush.bf16.msra.mxu0 %v3061
      %3129 = vmatmul.bf16.gmra.mxu0 %v3080
      %v3130 = vpop.f32.mrf.mxu0
      %v3131 = vadd.f32 %v3102, %v3130
      %v3132 = vpop.f32.mrf.mxu0
      %v3133 = vadd.f32 %v3104, %v3132
      %3134 = vmatmul.bf16.gmra.mxu0 %v3082
      %v3135 = vpop.f32.mrf.mxu0
      %v3136 = vadd.f32 %v3107, %v3135
      %v3137 = vpop.f32.mrf.mxu0
      %v3138 = vadd.f32 %v3109, %v3137
      %3139 = vmatmul.bf16.gmra.mxu0 %v3084
      %v3140 = vpop.f32.mrf.mxu0
      %v3141 = vadd.f32 %v3112, %v3140
      %v3142 = vpop.f32.mrf.mxu0
      %v3143 = vadd.f32 %v3114, %v3142
      %3144 = vmatmul.bf16.gmra.mxu0 %v3086
      %v3145 = vpop.f32.mrf.mxu0
      %v3146 = vadd.f32 %v3117, %v3145
      %v3147 = vpop.f32.mrf.mxu0
      %v3148 = vadd.f32 %v3119, %v3147
      %3149 = vdwg.mxu0
      %v3150 = vmax.f32 %v3131, 0.0
      %v3151 = vmax.f32 %v3133, 0.0
      %v3152 = vmax.f32 %v3136, 0.0
      %v3153 = vmax.f32 %v3138, 0.0
      %v3154 = vmax.f32 %v3141, 0.0
      %v3155 = vmax.f32 %v3143, 0.0
      %v3156 = vmax.f32 %v3146, 0.0
      %v3157 = vmax.f32 %v3148, 0.0
      %v3158 = vpack.c.bf16 %v3150, %v3150
      %v3159 = vpack.c.bf16 %v3151, %v3151
      %v3160 = vpack.c.bf16 %v3152, %v3152
      %v3161 = vpack.c.bf16 %v3153, %v3153
      %v3162 = vpack.c.bf16 %v3154, %v3154
      %v3163 = vpack.c.bf16 %v3155, %v3155
      %v3164 = vpack.c.bf16 %v3156, %v3156
      %v3165 = vpack.c.bf16 %v3157, %v3157
      %vm3166 = vcmask 125952
      %3167 = vst.msk [vmem:[%s409] sm:$0xf] %vm3166, %v3158
      %3168 = vst.msk [vmem:[%s409 + $0x4] sm:$0xf] %vm3166, %v3159
      %3169 = vst.msk [vmem:[%s409 + $0x8] sm:$0xf] %vm3166, %v3160
      %3170 = vst.msk [vmem:[%s409 + $0xc] sm:$0xf] %vm3166, %v3161
      %3171 = vst.msk [vmem:[%s409 + $0x10] sm:$0xf] %vm3166, %v3162
      %3172 = vst.msk [vmem:[%s409 + $0x14] sm:$0xf] %vm3166, %v3163
      %3173 = vst.msk [vmem:[%s409 + $0x18] sm:$0xf] %vm3166, %v3164
      %3174 = vst.msk [vmem:[%s409 + $0x1c] sm:$0xf] %vm3166, %v3165
      %p3175 = scmp.lt.s32.totalorder %s21, 1
      %s3176 = scalar_select %p3175, %s21, 1
      %p3177 = scmp.lt.s32.totalorder %s22, 0
      %s3178 = scalar_select %p3177, %s22, 0
      %s3179 = smul.addr %s3178, 8
      %s3180 = smul.addr %s3176, 8
      %s3181 = sadd.s32 %s3179, %s3180
      %s3182 = smul.addr %s3181, 4
      %s3183 = scalar_lea.vmem %s6, %s3182
      // Predicated region
      $region45: #{tpu_custom_call.1} parent=43 // pred_check
        %p3184 = pneg %p203
      $region46: #{tpu_custom_call.1} parent=43 // pred_check_branch
        %3186 = sbr.rel (%p3184) target = $region48
      $region47: #{tpu_custom_call.1} parent=43 // pred_region
        _
      $region48: #{tpu_custom_call.1} parent=43 // pred_fallthru
        _
    $region44: #{tpu_custom_call.1} parent=5 // pred_fallthru
      _
    %p3187 = scmp.le.s32.totalorder 2, %s12
    // Predicated region
    $region49: #{tpu_custom_call.1} parent=5 // pred_check
      %p3188 = pneg %p3187
    $region50: #{tpu_custom_call.1} parent=5 // pred_check_branch
      %3190 = sbr.rel (%p3188) target = $region52
    $region51: #{tpu_custom_call.1} parent=5 // pred_region
      %s3191 = ssub.s32 %s12, 2
      // Predicated region
      $region53: #{tpu_custom_call.1} parent=51 // pred_check
        %p3192 = pneg %p209
      $region54: #{tpu_custom_call.1} parent=51 // pred_check_branch
        %3194 = sbr.rel (%p3192) target = $region56
      $region55: #{tpu_custom_call.1} parent=51 // pred_region
        %p3195 = scmp.lt.s32.totalorder %s23, 1
        %s3196 = scalar_select %p3195, %s23, 1
        %p3197 = scmp.lt.s32.totalorder %s24, 0
        %s3198 = scalar_select %p3197, %s24, 0
        %s3199 = smul.addr %s3198, 8
        %s3200 = smul.addr %s3196, 8
        %s3201 = sadd.s32 %s3199, %s3200
        %s3202 = smul.addr %s3201, 4
        %s3203 = scalar_lea.vmem %s6, %s3202
      $region56: #{tpu_custom_call.1} parent=51 // pred_fallthru
        _
    $region52: #{tpu_custom_call.1} parent=5 // pred_fallthru
      _
  $region6: #{tpu_custom_call.1} parent=0 // loop_footer
    %s16 = sadd.s32 1, %s12
  $region7: #{tpu_custom_call.1} parent=0 // loop_footer_branch
    %11 = sbr.rel target = $region3
  $region8: #{tpu_custom_call.1} parent=0 // loop_exit
    _

</llo_original>
